<compile_context>
chip_gen: v7x
topology: tpu7x:2x2x1
jax: 0.10.0
libtpu: 0.0.40
codegen_flags: <defaults>
</compile_context>

<pallas_src>
import functools

import jax
import jax.numpy as jnp
from jax.experimental import pallas as pl
from jax.experimental.pallas import tpu as pltpu


def _round_up(x, m):
    return (x + m - 1) // m * m


def _pad_gate_cols(w, h, hp):
    """Pad the per-gate blocks of a (..., 4*h) [i|f|g|o] weight to (..., 4*hp)."""
    if hp == h:
        return w
    lead = w.shape[:-1]
    w4 = w.reshape(*lead, 4, h)
    pad = [(0, 0)] * len(lead) + [(0, 0), (0, hp - h)]
    return jnp.pad(w4, pad).reshape(*lead, 4 * hp)


def lstm_recurrence_kernel(gx_ref, whh_ref, h_out_ref, h_sc, c_sc):
    """Serial LSTM recurrence over one (batch-shard, time-chunk) tile.

    gx_ref   : (Tc, Bs, 4*Hp) f32  precomputed x @ W_ih for this chunk
    whh_ref  : (Hp, 4*Hp)     bf16 hidden->gates weight (transposed torch W_hh)
    h_out_ref: (Tc, Bs, Hp)   bf16 per-step hidden states for this chunk
    h_sc,c_sc: (Bs, Hp)       f32  recurrent state carried across time chunks
    """

    @pl.when(pl.program_id(1) == 0)
    def _():
        h_sc[...] = jnp.zeros_like(h_sc)
        c_sc[...] = jnp.zeros_like(c_sc)

    hp = h_sc.shape[1]
    tc = gx_ref.shape[0]

    def step(t, carry):
        # Only the h @ W_hh matmul sits on the serialized critical path; the
        # input projection was hoisted out of the loop.
        gates = gx_ref[t] + jnp.dot(
            h_sc[...].astype(whh_ref.dtype), whh_ref[...],
            preferred_element_type=jnp.float32)
        # PyTorch gate order i, f, g, o; Hp % 128 == 0 so these are
        # lane-aligned slab selects, not masked cross-lane extractions.
        i_g = jax.nn.sigmoid(gates[:, 0:hp])
        f_g = jax.nn.sigmoid(gates[:, hp:2 * hp])
        g_g = jnp.tanh(gates[:, 2 * hp:3 * hp])
        o_g = jax.nn.sigmoid(gates[:, 3 * hp:4 * hp])
        c_new = f_g * c_sc[...] + i_g * g_g
        h_new = o_g * jnp.tanh(c_new)
        c_sc[...] = c_new
        h_sc[...] = h_new
        h_out_ref[t] = h_new.astype(h_out_ref.dtype)
        return carry

    jax.lax.fori_loop(0, tc, step, 0, unroll=True)


@functools.partial(jax.jit, static_argnames=("time_chunk", "batch_shard"))
def decoder_lstm_forward(features, captions, params, *, time_chunk=8,
                         batch_shard=8):
    """Matches DecoderLSTM.forward(features, captions) (LSTM bias=False)."""
    embed_table = params["embedding"]      # (V, E)
    w_ih_t = params["w_ih_t"]              # (E, 4H)  transposed torch weight_ih_l0
    w_hh_t = params["w_hh_t"]              # (H, 4H)  transposed torch weight_hh_l0
    w_out_t = params["w_out_t"]            # (H, V)   transposed torch linear.weight
    b_out = params["b_out"]                # (1, V)

    B, E = features.shape
    H = w_hh_t.shape[0]
    V = w_out_t.shape[1]

    # Glue: embedding gather + concat of the image feature vector (plain JAX).
    emb = embed_table[captions[:, :-1]]                               # (B, T-1, E)
    x = jnp.concatenate([features[:, None, :], emb], axis=1)          # (B, T, E)
    T = x.shape[1]

    # TPU layout padding: batch -> sublane multiple (8), hidden -> lane multiple (128).
    Hp = _round_up(H, 128)
    Bs = max(8, _round_up(batch_shard, 8))
    Bp = _round_up(B, Bs)
    Tc = min(time_chunk, T)
    Tp = _round_up(T, Tc)

    # Pad weights. Gate blocks (i|f|g|o) are padded per block so the kernel's
    # lane-aligned gate slices stay correct; padded W_hh / W_out rows are zero
    # so the padded h columns stay exactly zero through the recurrence.
    w_ih_p = _pad_gate_cols(w_ih_t, H, Hp).astype(jnp.bfloat16)                # (E, 4Hp)
    w_hh_p = _pad_gate_cols(
        jnp.pad(w_hh_t, ((0, Hp - H), (0, 0))), H, Hp).astype(jnp.bfloat16)    # (Hp, 4Hp)
    w_out_p = jnp.pad(w_out_t, ((0, Hp - H), (0, 0))).astype(jnp.bfloat16)     # (Hp, V)

    # Hoisted input projection: one big GEMM, bf16 operands / f32 accumulation.
    x_p = jnp.pad(x, ((0, Bp - B), (0, 0), (0, 0)))                            # (Bp, T, E)
    gx = jnp.dot(x_p.reshape(Bp * T, E).astype(jnp.bfloat16), w_ih_p,
                 preferred_element_type=jnp.float32).reshape(Bp, T, 4 * Hp)
    gx = jnp.transpose(gx, (1, 0, 2))                                          # (T, Bp, 4Hp)
    gx = jnp.pad(gx, ((0, Tp - T), (0, 0), (0, 0)))                            # (Tp, Bp, 4Hp)

    n_b = Bp // Bs
    n_t = Tp // Tc

    h_tm = pl.pallas_call(
        lstm_recurrence_kernel,
        out_shape=jax.ShapeDtypeStruct((Tp, Bp, Hp), jnp.bfloat16),
        grid_spec=pltpu.PrefetchScalarGridSpec(
            num_scalar_prefetch=0,
            grid=(n_b, n_t),
            in_specs=[
                pl.BlockSpec((Tc, Bs, 4 * Hp), lambda b, t: (t, b, 0)),
                pl.BlockSpec((Hp, 4 * Hp), lambda b, t: (0, 0)),
            ],
            out_specs=pl.BlockSpec((Tc, Bs, Hp), lambda b, t: (t, b, 0)),
            scratch_shapes=[
                pltpu.VMEM((Bs, Hp), jnp.float32),   # h state
                pltpu.VMEM((Bs, Hp), jnp.float32),   # c state
            ],
        ),
        compiler_params=pltpu.CompilerParams(
            dimension_semantics=("parallel", "arbitrary")),
    )(gx, w_hh_p)

    # Hoisted vocab projection: one big GEMM + bias, producing batch-first logits.
    h_bt = jnp.transpose(h_tm[:T, :B], (1, 0, 2))                              # (B, T, Hp)
    logits = jnp.dot(h_bt.reshape(B * T, Hp), w_out_p,
                     preferred_element_type=jnp.float32).reshape(B, T, V)
    return logits + b_out[0]


def _reference_forward(features, captions, params):
    """Pure-JAX f32 reference (mirrors torch semantics, LSTM bias=False)."""
    emb = params["embedding"][captions[:, :-1]]
    x = jnp.concatenate([features[:, None, :], emb], axis=1)  # (B, T, E)
    B, T, E = x.shape
    H = params["w_hh_t"].shape[0]

    def step(carry, xt):
        h, c = carry
        gates = xt @ params["w_ih_t"] + h @ params["w_hh_t"]
        i = jax.nn.sigmoid(gates[:, 0:H])
        f = jax.nn.sigmoid(gates[:, H:2 * H])
        g = jnp.tanh(gates[:, 2 * H:3 * H])
        o = jax.nn.sigmoid(gates[:, 3 * H:4 * H])
        c = f * c + i * g
        h = o * jnp.tanh(c)
        return (h, c), h

    h0 = jnp.zeros((B, H), jnp.float32)
    c0 = jnp.zeros((B, H), jnp.float32)
    _, hs = jax.lax.scan(step, (h0, c0), jnp.transpose(x, (1, 0, 2)))
    hs = jnp.transpose(hs, (1, 0, 2))  # (B, T, H)
    return hs @ params["w_out_t"] + params["b_out"][0]


if __name__ == "__main__":
    # Small, forward-consistent shapes.
    batch = 2
    embed_size = 32
    hidden_size = 32
    vocab_size = 32
    cap_len = 8          # captions length; forward uses captions[:, :-1] -> T = 8

    key = jax.random.PRNGKey(0)
    k_emb, k_ih, k_hh, k_w, k_b, k_feat, k_cap = jax.random.split(key, 7)

    params = {
        # nn.Embedding(vocab_size, embed_size).weight : (V, E)
        "embedding": jax.random.normal(k_emb, (vocab_size, embed_size), jnp.float32) * 0.1,
        # nn.LSTM weight_ih_l0 is (4H, E); stored transposed (E, 4H)
        "w_ih_t": jax.random.normal(k_ih, (embed_size, 4 * hidden_size), jnp.float32) * 0.1,
        # nn.LSTM weight_hh_l0 is (4H, H); stored transposed (H, 4H)
        "w_hh_t": jax.random.normal(k_hh, (hidden_size, 4 * hidden_size), jnp.float32) * 0.1,
        # nn.Linear(hidden, vocab).weight is (V, H); stored transposed (H, V)
        "w_out_t": jax.random.normal(k_w, (hidden_size, vocab_size), jnp.float32) * 0.1,
        # nn.Linear bias (V,), stored as (1, V)
        "b_out": jax.random.normal(k_b, (1, vocab_size), jnp.float32) * 0.1,
    }

    features = jax.random.normal(k_feat, (batch, embed_size), jnp.float32)
    captions = jax.random.randint(k_cap, (batch, cap_len), 0, vocab_size, jnp.int32)

    out = decoder_lstm_forward(features, captions, params)
    out = jax.block_until_ready(out)

    ref = _reference_forward(features, captions, params)
    assert out.shape == (batch, cap_len, vocab_size), out.shape
    # bf16 MXU operands / f32 accumulation vs. pure-f32 reference.
    assert jnp.allclose(out, ref, atol=2e-2, rtol=2e-2), "mismatch vs reference"

    print("KERNEL_OK")
</pallas_src>

<mosaic_0001>
module attributes {stable_mosaic.version = 11 : i64} {
  func.func @lstm_recurrence_kernel(%arg0: i32, %arg1: i32, %arg2: memref<8x8x512xf32, #tpu.memory_space<vmem>>, %arg3: memref<128x512xbf16, #tpu.memory_space<vmem>>, %arg4: memref<8x8x128xbf16, #tpu.memory_space<vmem>>, %arg5: memref<8x128xf32, #tpu.memory_space<vmem>>, %arg6: memref<8x128xf32, #tpu.memory_space<vmem>>) attributes {dimension_semantics = [#tpu.dimension_semantics<parallel>, #tpu.dimension_semantics<arbitrary>], iteration_bounds = array<i64: 1, 1>, scalar_prefetch = 0 : i64, scratch_operands = 2 : i64, tpu.core_type = #tpu.core_type<tc>, window_params = [{transform_indices = @transform_0, window_bounds = array<i64: 8, 8, 512>}, {pipeline_mode = #tpu.pipeline_mode<synchronous>, transform_indices = @transform_1, window_bounds = array<i64: 128, 512>}, {transform_indices = @transform_2, window_bounds = array<i64: 8, 8, 128>}]} {
    %c0_i32 = arith.constant 0 : i32
    %0 = arith.cmpi eq, %arg1, %c0_i32 : i32
    %1 = arith.extui %0 : i1 to i32
    %c0_i32_0 = arith.constant 0 : i32
    %2 = arith.cmpi ne, %1, %c0_i32_0 : i32
    scf.if %2 {
      %cst_144 = arith.constant 0.000000e+00 : f32
      %331 = vector.broadcast %cst_144 : f32 to vector<8x128xf32>
      %c0_145 = arith.constant 0 : index
      %c0_146 = arith.constant 0 : index
      %332 = vector.load %arg5[%c0_145, %c0_146] : memref<8x128xf32, #tpu.memory_space<vmem>>, vector<8x128xf32>
      tpu.vector_store %arg5[%c0_145, %c0_146], %331 {strides = array<i32>} : memref<8x128xf32, #tpu.memory_space<vmem>>, vector<8x128xf32>,
      %cst_147 = arith.constant 0.000000e+00 : f32
      %333 = vector.broadcast %cst_147 : f32 to vector<8x128xf32>
      %c0_148 = arith.constant 0 : index
      %c0_149 = arith.constant 0 : index
      %334 = vector.load %arg6[%c0_148, %c0_149] : memref<8x128xf32, #tpu.memory_space<vmem>>, vector<8x128xf32>
      tpu.vector_store %arg6[%c0_148, %c0_149], %333 {strides = array<i32>} : memref<8x128xf32, #tpu.memory_space<vmem>>, vector<8x128xf32>,
    } else {
    }
    %c0_i32_1 = arith.constant 0 : i32
    %3 = arith.index_cast %c0_i32_1 : i32 to index
    %c0 = arith.constant 0 : index
    %c0_2 = arith.constant 0 : index
    %4 = vector.load %arg2[%3, %c0, %c0_2] : memref<8x8x512xf32, #tpu.memory_space<vmem>>, vector<1x8x512xf32>
    %5 = vector.shape_cast %4 : vector<1x8x512xf32> to vector<8x512xf32>
    %c0_3 = arith.constant 0 : index
    %c0_4 = arith.constant 0 : index
    %6 = vector.load %arg5[%c0_3, %c0_4] : memref<8x128xf32, #tpu.memory_space<vmem>>, vector<8x128xf32>
    %7 = arith.truncf %6 : vector<8x128xf32> to vector<8x128xbf16>
    %c0_5 = arith.constant 0 : index
    %c0_6 = arith.constant 0 : index
    %8 = vector.load %arg3[%c0_5, %c0_6] : memref<128x512xbf16, #tpu.memory_space<vmem>>, vector<128x512xbf16>
    %cst = arith.constant dense<0.000000e+00> : vector<8x512xf32>
    %9 = tpu.matmul %7, %8, %cst {dimension_numbers = #tpu.dot_dimension_numbers<[1], [0], [0], [1], [0, 0, 1, 1], [], []>} : vector<8x128xbf16>, vector<128x512xbf16>, vector<8x512xf32> -> vector<8x512xf32>
    %10 = arith.addf %5, %9 : vector<8x512xf32>
    %11 = vector.extract_strided_slice %10 {offsets = [0, 0], sizes = [8, 128], strides = [1, 1]} : vector<8x512xf32> to vector<8x128xf32>
    %12 = arith.negf %11 : vector<8x128xf32>
    %13 = math.exp %12 : vector<8x128xf32>
    %cst_7 = arith.constant 1.000000e+00 : f32
    %14 = vector.broadcast %cst_7 : f32 to vector<8x128xf32>
    %15 = arith.addf %14, %13 : vector<8x128xf32>
    %16 = arith.divf %14, %15 : vector<8x128xf32>
    %17 = vector.extract_strided_slice %10 {offsets = [0, 128], sizes = [8, 128], strides = [1, 1]} : vector<8x512xf32> to vector<8x128xf32>
    %18 = arith.negf %17 : vector<8x128xf32>
    %19 = math.exp %18 : vector<8x128xf32>
    %cst_8 = arith.constant 1.000000e+00 : f32
    %20 = vector.broadcast %cst_8 : f32 to vector<8x128xf32>
    %21 = arith.addf %20, %19 : vector<8x128xf32>
    %22 = arith.divf %20, %21 : vector<8x128xf32>
    %23 = vector.extract_strided_slice %10 {offsets = [0, 256], sizes = [8, 128], strides = [1, 1]} : vector<8x512xf32> to vector<8x128xf32>
    %24 = math.tanh %23 : vector<8x128xf32>
    %25 = vector.extract_strided_slice %10 {offsets = [0, 384], sizes = [8, 128], strides = [1, 1]} : vector<8x512xf32> to vector<8x128xf32>
    %26 = arith.negf %25 : vector<8x128xf32>
    %27 = math.exp %26 : vector<8x128xf32>
    %cst_9 = arith.constant 1.000000e+00 : f32
    %28 = vector.broadcast %cst_9 : f32 to vector<8x128xf32>
    %29 = arith.addf %28, %27 : vector<8x128xf32>
    %30 = arith.divf %28, %29 : vector<8x128xf32>
    %c0_10 = arith.constant 0 : index
    %c0_11 = arith.constant 0 : index
    %31 = vector.load %arg6[%c0_10, %c0_11] : memref<8x128xf32, #tpu.memory_space<vmem>>, vector<8x128xf32>
    %32 = arith.mulf %22, %31 : vector<8x128xf32>
    %33 = arith.mulf %16, %24 : vector<8x128xf32>
    %34 = arith.addf %32, %33 : vector<8x128xf32>
    %35 = math.tanh %34 : vector<8x128xf32>
    %36 = arith.mulf %30, %35 : vector<8x128xf32>
    %c0_12 = arith.constant 0 : index
    %c0_13 = arith.constant 0 : index
    %37 = vector.load %arg6[%c0_12, %c0_13] : memref<8x128xf32, #tpu.memory_space<vmem>>, vector<8x128xf32>
    tpu.vector_store %arg6[%c0_12, %c0_13], %34 {strides = array<i32>} : memref<8x128xf32, #tpu.memory_space<vmem>>, vector<8x128xf32>,
    %c0_14 = arith.constant 0 : index
    %c0_15 = arith.constant 0 : index
    %38 = vector.load %arg5[%c0_14, %c0_15] : memref<8x128xf32, #tpu.memory_space<vmem>>, vector<8x128xf32>
    tpu.vector_store %arg5[%c0_14, %c0_15], %36 {strides = array<i32>} : memref<8x128xf32, #tpu.memory_space<vmem>>, vector<8x128xf32>,
    %39 = arith.truncf %36 : vector<8x128xf32> to vector<8x128xbf16>
    %40 = arith.index_cast %c0_i32_1 : i32 to index
    %c0_16 = arith.constant 0 : index
    %c0_17 = arith.constant 0 : index
    %41 = vector.load %arg4[%40, %c0_16, %c0_17] : memref<8x8x128xbf16, #tpu.memory_space<vmem>>, vector<1x8x128xbf16>
    %42 = vector.shape_cast %41 : vector<1x8x128xbf16> to vector<8x128xbf16>
    %43 = vector.shape_cast %39 : vector<8x128xbf16> to vector<1x8x128xbf16>
    tpu.vector_store %arg4[%40, %c0_16, %c0_17], %43 {strides = array<i32>} : memref<8x8x128xbf16, #tpu.memory_space<vmem>>, vector<1x8x128xbf16>,
    %c1_i32 = arith.constant 1 : i32
    %44 = arith.index_cast %c1_i32 : i32 to index
    %c0_18 = arith.constant 0 : index
    %c0_19 = arith.constant 0 : index
    %45 = vector.load %arg2[%44, %c0_18, %c0_19] : memref<8x8x512xf32, #tpu.memory_space<vmem>>, vector<1x8x512xf32>
    %46 = vector.shape_cast %45 : vector<1x8x512xf32> to vector<8x512xf32>
    %c0_20 = arith.constant 0 : index
    %c0_21 = arith.constant 0 : index
    %47 = vector.load %arg5[%c0_20, %c0_21] : memref<8x128xf32, #tpu.memory_space<vmem>>, vector<8x128xf32>
    %48 = arith.truncf %47 : vector<8x128xf32> to vector<8x128xbf16>
    %c0_22 = arith.constant 0 : index
    %c0_23 = arith.constant 0 : index
    %49 = vector.load %arg3[%c0_22, %c0_23] : memref<128x512xbf16, #tpu.memory_space<vmem>>, vector<128x512xbf16>
    %cst_24 = arith.constant dense<0.000000e+00> : vector<8x512xf32>
    %50 = tpu.matmul %48, %49, %cst_24 {dimension_numbers = #tpu.dot_dimension_numbers<[1], [0], [0], [1], [0, 0, 1, 1], [], []>} : vector<8x128xbf16>, vector<128x512xbf16>, vector<8x512xf32> -> vector<8x512xf32>
    %51 = arith.addf %46, %50 : vector<8x512xf32>
    %52 = vector.extract_strided_slice %51 {offsets = [0, 0], sizes = [8, 128], strides = [1, 1]} : vector<8x512xf32> to vector<8x128xf32>
    %53 = arith.negf %52 : vector<8x128xf32>
    %54 = math.exp %53 : vector<8x128xf32>
    %cst_25 = arith.constant 1.000000e+00 : f32
    %55 = vector.broadcast %cst_25 : f32 to vector<8x128xf32>
    %56 = arith.addf %55, %54 : vector<8x128xf32>
    %57 = arith.divf %55, %56 : vector<8x128xf32>
    %58 = vector.extract_strided_slice %51 {offsets = [0, 128], sizes = [8, 128], strides = [1, 1]} : vector<8x512xf32> to vector<8x128xf32>
    %59 = arith.negf %58 : vector<8x128xf32>
    %60 = math.exp %59 : vector<8x128xf32>
    %cst_26 = arith.constant 1.000000e+00 : f32
    %61 = vector.broadcast %cst_26 : f32 to vector<8x128xf32>
    %62 = arith.addf %61, %60 : vector<8x128xf32>
    %63 = arith.divf %61, %62 : vector<8x128xf32>
    %64 = vector.extract_strided_slice %51 {offsets = [0, 256], sizes = [8, 128], strides = [1, 1]} : vector<8x512xf32> to vector<8x128xf32>
    %65 = math.tanh %64 : vector<8x128xf32>
    %66 = vector.extract_strided_slice %51 {offsets = [0, 384], sizes = [8, 128], strides = [1, 1]} : vector<8x512xf32> to vector<8x128xf32>
    %67 = arith.negf %66 : vector<8x128xf32>
    %68 = math.exp %67 : vector<8x128xf32>
    %cst_27 = arith.constant 1.000000e+00 : f32
    %69 = vector.broadcast %cst_27 : f32 to vector<8x128xf32>
    %70 = arith.addf %69, %68 : vector<8x128xf32>
    %71 = arith.divf %69, %70 : vector<8x128xf32>
    %c0_28 = arith.constant 0 : index
    %c0_29 = arith.constant 0 : index
    %72 = vector.load %arg6[%c0_28, %c0_29] : memref<8x128xf32, #tpu.memory_space<vmem>>, vector<8x128xf32>
    %73 = arith.mulf %63, %72 : vector<8x128xf32>
    %74 = arith.mulf %57, %65 : vector<8x128xf32>
    %75 = arith.addf %73, %74 : vector<8x128xf32>
    %76 = math.tanh %75 : vector<8x128xf32>
    %77 = arith.mulf %71, %76 : vector<8x128xf32>
    %c0_30 = arith.constant 0 : index
    %c0_31 = arith.constant 0 : index
    %78 = vector.load %arg6[%c0_30, %c0_31] : memref<8x128xf32, #tpu.memory_space<vmem>>, vector<8x128xf32>
    tpu.vector_store %arg6[%c0_30, %c0_31], %75 {strides = array<i32>} : memref<8x128xf32, #tpu.memory_space<vmem>>, vector<8x128xf32>,
    %c0_32 = arith.constant 0 : index
    %c0_33 = arith.constant 0 : index
    %79 = vector.load %arg5[%c0_32, %c0_33] : memref<8x128xf32, #tpu.memory_space<vmem>>, vector<8x128xf32>
    tpu.vector_store %arg5[%c0_32, %c0_33], %77 {strides = array<i32>} : memref<8x128xf32, #tpu.memory_space<vmem>>, vector<8x128xf32>,
    %80 = arith.truncf %77 : vector<8x128xf32> to vector<8x128xbf16>
    %81 = arith.index_cast %c1_i32 : i32 to index
    %c0_34 = arith.constant 0 : index
    %c0_35 = arith.constant 0 : index
    %82 = vector.load %arg4[%81, %c0_34, %c0_35] : memref<8x8x128xbf16, #tpu.memory_space<vmem>>, vector<1x8x128xbf16>
    %83 = vector.shape_cast %82 : vector<1x8x128xbf16> to vector<8x128xbf16>
    %84 = vector.shape_cast %80 : vector<8x128xbf16> to vector<1x8x128xbf16>
    tpu.vector_store %arg4[%81, %c0_34, %c0_35], %84 {strides = array<i32>} : memref<8x8x128xbf16, #tpu.memory_space<vmem>>, vector<1x8x128xbf16>,
    %c2_i32 = arith.constant 2 : i32
    %85 = arith.index_cast %c2_i32 : i32 to index
    %c0_36 = arith.constant 0 : index
    %c0_37 = arith.constant 0 : index
    %86 = vector.load %arg2[%85, %c0_36, %c0_37] : memref<8x8x512xf32, #tpu.memory_space<vmem>>, vector<1x8x512xf32>
    %87 = vector.shape_cast %86 : vector<1x8x512xf32> to vector<8x512xf32>
    %c0_38 = arith.constant 0 : index
    %c0_39 = arith.constant 0 : index
    %88 = vector.load %arg5[%c0_38, %c0_39] : memref<8x128xf32, #tpu.memory_space<vmem>>, vector<8x128xf32>
    %89 = arith.truncf %88 : vector<8x128xf32> to vector<8x128xbf16>
    %c0_40 = arith.constant 0 : index
    %c0_41 = arith.constant 0 : index
    %90 = vector.load %arg3[%c0_40, %c0_41] : memref<128x512xbf16, #tpu.memory_space<vmem>>, vector<128x512xbf16>
    %cst_42 = arith.constant dense<0.000000e+00> : vector<8x512xf32>
    %91 = tpu.matmul %89, %90, %cst_42 {dimension_numbers = #tpu.dot_dimension_numbers<[1], [0], [0], [1], [0, 0, 1, 1], [], []>} : vector<8x128xbf16>, vector<128x512xbf16>, vector<8x512xf32> -> vector<8x512xf32>
    %92 = arith.addf %87, %91 : vector<8x512xf32>
    %93 = vector.extract_strided_slice %92 {offsets = [0, 0], sizes = [8, 128], strides = [1, 1]} : vector<8x512xf32> to vector<8x128xf32>
    %94 = arith.negf %93 : vector<8x128xf32>
    %95 = math.exp %94 : vector<8x128xf32>
    %cst_43 = arith.constant 1.000000e+00 : f32
    %96 = vector.broadcast %cst_43 : f32 to vector<8x128xf32>
    %97 = arith.addf %96, %95 : vector<8x128xf32>
    %98 = arith.divf %96, %97 : vector<8x128xf32>
    %99 = vector.extract_strided_slice %92 {offsets = [0, 128], sizes = [8, 128], strides = [1, 1]} : vector<8x512xf32> to vector<8x128xf32>
    %100 = arith.negf %99 : vector<8x128xf32>
    %101 = math.exp %100 : vector<8x128xf32>
    %cst_44 = arith.constant 1.000000e+00 : f32
    %102 = vector.broadcast %cst_44 : f32 to vector<8x128xf32>
    %103 = arith.addf %102, %101 : vector<8x128xf32>
    %104 = arith.divf %102, %103 : vector<8x128xf32>
    %105 = vector.extract_strided_slice %92 {offsets = [0, 256], sizes = [8, 128], strides = [1, 1]} : vector<8x512xf32> to vector<8x128xf32>
    %106 = math.tanh %105 : vector<8x128xf32>
    %107 = vector.extract_strided_slice %92 {offsets = [0, 384], sizes = [8, 128], strides = [1, 1]} : vector<8x512xf32> to vector<8x128xf32>
    %108 = arith.negf %107 : vector<8x128xf32>
    %109 = math.exp %108 : vector<8x128xf32>
    %cst_45 = arith.constant 1.000000e+00 : f32
    %110 = vector.broadcast %cst_45 : f32 to vector<8x128xf32>
    %111 = arith.addf %110, %109 : vector<8x128xf32>
    %112 = arith.divf %110, %111 : vector<8x128xf32>
    %c0_46 = arith.constant 0 : index
    %c0_47 = arith.constant 0 : index
    %113 = vector.load %arg6[%c0_46, %c0_47] : memref<8x128xf32, #tpu.memory_space<vmem>>, vector<8x128xf32>
    %114 = arith.mulf %104, %113 : vector<8x128xf32>
    %115 = arith.mulf %98, %106 : vector<8x128xf32>
    %116 = arith.addf %114, %115 : vector<8x128xf32>
    %117 = math.tanh %116 : vector<8x128xf32>
    %118 = arith.mulf %112, %117 : vector<8x128xf32>
    %c0_48 = arith.constant 0 : index
    %c0_49 = arith.constant 0 : index
    %119 = vector.load %arg6[%c0_48, %c0_49] : memref<8x128xf32, #tpu.memory_space<vmem>>, vector<8x128xf32>
    tpu.vector_store %arg6[%c0_48, %c0_49], %116 {strides = array<i32>} : memref<8x128xf32, #tpu.memory_space<vmem>>, vector<8x128xf32>,
    %c0_50 = arith.constant 0 : index
    %c0_51 = arith.constant 0 : index
    %120 = vector.load %arg5[%c0_50, %c0_51] : memref<8x128xf32, #tpu.memory_space<vmem>>, vector<8x128xf32>
    tpu.vector_store %arg5[%c0_50, %c0_51], %118 {strides = array<i32>} : memref<8x128xf32, #tpu.memory_space<vmem>>, vector<8x128xf32>,
    %121 = arith.truncf %118 : vector<8x128xf32> to vector<8x128xbf16>
    %122 = arith.index_cast %c2_i32 : i32 to index
    %c0_52 = arith.constant 0 : index
    %c0_53 = arith.constant 0 : index
    %123 = vector.load %arg4[%122, %c0_52, %c0_53] : memref<8x8x128xbf16, #tpu.memory_space<vmem>>, vector<1x8x128xbf16>
    %124 = vector.shape_cast %123 : vector<1x8x128xbf16> to vector<8x128xbf16>
    %125 = vector.shape_cast %121 : vector<8x128xbf16> to vector<1x8x128xbf16>
    tpu.vector_store %arg4[%122, %c0_52, %c0_53], %125 {strides = array<i32>} : memref<8x8x128xbf16, #tpu.memory_space<vmem>>, vector<1x8x128xbf16>,
    %c3_i32 = arith.constant 3 : i32
    %126 = arith.index_cast %c3_i32 : i32 to index
    %c0_54 = arith.constant 0 : index
    %c0_55 = arith.constant 0 : index
    %127 = vector.load %arg2[%126, %c0_54, %c0_55] : memref<8x8x512xf32, #tpu.memory_space<vmem>>, vector<1x8x512xf32>
    %128 = vector.shape_cast %127 : vector<1x8x512xf32> to vector<8x512xf32>
    %c0_56 = arith.constant 0 : index
    %c0_57 = arith.constant 0 : index
    %129 = vector.load %arg5[%c0_56, %c0_57] : memref<8x128xf32, #tpu.memory_space<vmem>>, vector<8x128xf32>
    %130 = arith.truncf %129 : vector<8x128xf32> to vector<8x128xbf16>
    %c0_58 = arith.constant 0 : index
    %c0_59 = arith.constant 0 : index
    %131 = vector.load %arg3[%c0_58, %c0_59] : memref<128x512xbf16, #tpu.memory_space<vmem>>, vector<128x512xbf16>
    %cst_60 = arith.constant dense<0.000000e+00> : vector<8x512xf32>
    %132 = tpu.matmul %130, %131, %cst_60 {dimension_numbers = #tpu.dot_dimension_numbers<[1], [0], [0], [1], [0, 0, 1, 1], [], []>} : vector<8x128xbf16>, vector<128x512xbf16>, vector<8x512xf32> -> vector<8x512xf32>
    %133 = arith.addf %128, %132 : vector<8x512xf32>
    %134 = vector.extract_strided_slice %133 {offsets = [0, 0], sizes = [8, 128], strides = [1, 1]} : vector<8x512xf32> to vector<8x128xf32>
    %135 = arith.negf %134 : vector<8x128xf32>
    %136 = math.exp %135 : vector<8x128xf32>
    %cst_61 = arith.constant 1.000000e+00 : f32
    %137 = vector.broadcast %cst_61 : f32 to vector<8x128xf32>
    %138 = arith.addf %137, %136 : vector<8x128xf32>
    %139 = arith.divf %137, %138 : vector<8x128xf32>
    %140 = vector.extract_strided_slice %133 {offsets = [0, 128], sizes = [8, 128], strides = [1, 1]} : vector<8x512xf32> to vector<8x128xf32>
    %141 = arith.negf %140 : vector<8x128xf32>
    %142 = math.exp %141 : vector<8x128xf32>
    %cst_62 = arith.constant 1.000000e+00 : f32
    %143 = vector.broadcast %cst_62 : f32 to vector<8x128xf32>
    %144 = arith.addf %143, %142 : vector<8x128xf32>
    %145 = arith.divf %143, %144 : vector<8x128xf32>
    %146 = vector.extract_strided_slice %133 {offsets = [0, 256], sizes = [8, 128], strides = [1, 1]} : vector<8x512xf32> to vector<8x128xf32>
    %147 = math.tanh %146 : vector<8x128xf32>
    %148 = vector.extract_strided_slice %133 {offsets = [0, 384], sizes = [8, 128], strides = [1, 1]} : vector<8x512xf32> to vector<8x128xf32>
    %149 = arith.negf %148 : vector<8x128xf32>
    %150 = math.exp %149 : vector<8x128xf32>
    %cst_63 = arith.constant 1.000000e+00 : f32
    %151 = vector.broadcast %cst_63 : f32 to vector<8x128xf32>
    %152 = arith.addf %151, %150 : vector<8x128xf32>
    %153 = arith.divf %151, %152 : vector<8x128xf32>
    %c0_64 = arith.constant 0 : index
    %c0_65 = arith.constant 0 : index
    %154 = vector.load %arg6[%c0_64, %c0_65] : memref<8x128xf32, #tpu.memory_space<vmem>>, vector<8x128xf32>
    %155 = arith.mulf %145, %154 : vector<8x128xf32>
    %156 = arith.mulf %139, %147 : vector<8x128xf32>
    %157 = arith.addf %155, %156 : vector<8x128xf32>
    %158 = math.tanh %157 : vector<8x128xf32>
    %159 = arith.mulf %153, %158 : vector<8x128xf32>
    %c0_66 = arith.constant 0 : index
    %c0_67 = arith.constant 0 : index
    %160 = vector.load %arg6[%c0_66, %c0_67] : memref<8x128xf32, #tpu.memory_space<vmem>>, vector<8x128xf32>
    tpu.vector_store %arg6[%c0_66, %c0_67], %157 {strides = array<i32>} : memref<8x128xf32, #tpu.memory_space<vmem>>, vector<8x128xf32>,
    %c0_68 = arith.constant 0 : index
    %c0_69 = arith.constant 0 : index
    %161 = vector.load %arg5[%c0_68, %c0_69] : memref<8x128xf32, #tpu.memory_space<vmem>>, vector<8x128xf32>
    tpu.vector_store %arg5[%c0_68, %c0_69], %159 {strides = array<i32>} : memref<8x128xf32, #tpu.memory_space<vmem>>, vector<8x128xf32>,
    %162 = arith.truncf %159 : vector<8x128xf32> to vector<8x128xbf16>
    %163 = arith.index_cast %c3_i32 : i32 to index
    %c0_70 = arith.constant 0 : index
    %c0_71 = arith.constant 0 : index
    %164 = vector.load %arg4[%163, %c0_70, %c0_71] : memref<8x8x128xbf16, #tpu.memory_space<vmem>>, vector<1x8x128xbf16>
    %165 = vector.shape_cast %164 : vector<1x8x128xbf16> to vector<8x128xbf16>
    %166 = vector.shape_cast %162 : vector<8x128xbf16> to vector<1x8x128xbf16>
    tpu.vector_store %arg4[%163, %c0_70, %c0_71], %166 {strides = array<i32>} : memref<8x8x128xbf16, #tpu.memory_space<vmem>>, vector<1x8x128xbf16>,
    %c4_i32 = arith.constant 4 : i32
    %167 = arith.index_cast %c4_i32 : i32 to index
    %c0_72 = arith.constant 0 : index
    %c0_73 = arith.constant 0 : index
    %168 = vector.load %arg2[%167, %c0_72, %c0_73] : memref<8x8x512xf32, #tpu.memory_space<vmem>>, vector<1x8x512xf32>
    %169 = vector.shape_cast %168 : vector<1x8x512xf32> to vector<8x512xf32>
    %c0_74 = arith.constant 0 : index
    %c0_75 = arith.constant 0 : index
    %170 = vector.load %arg5[%c0_74, %c0_75] : memref<8x128xf32, #tpu.memory_space<vmem>>, vector<8x128xf32>
    %171 = arith.truncf %170 : vector<8x128xf32> to vector<8x128xbf16>
    %c0_76 = arith.constant 0 : index
    %c0_77 = arith.constant 0 : index
    %172 = vector.load %arg3[%c0_76, %c0_77] : memref<128x512xbf16, #tpu.memory_space<vmem>>, vector<128x512xbf16>
    %cst_78 = arith.constant dense<0.000000e+00> : vector<8x512xf32>
    %173 = tpu.matmul %171, %172, %cst_78 {dimension_numbers = #tpu.dot_dimension_numbers<[1], [0], [0], [1], [0, 0, 1, 1], [], []>} : vector<8x128xbf16>, vector<128x512xbf16>, vector<8x512xf32> -> vector<8x512xf32>
    %174 = arith.addf %169, %173 : vector<8x512xf32>
    %175 = vector.extract_strided_slice %174 {offsets = [0, 0], sizes = [8, 128], strides = [1, 1]} : vector<8x512xf32> to vector<8x128xf32>
    %176 = arith.negf %175 : vector<8x128xf32>
    %177 = math.exp %176 : vector<8x128xf32>
    %cst_79 = arith.constant 1.000000e+00 : f32
    %178 = vector.broadcast %cst_79 : f32 to vector<8x128xf32>
    %179 = arith.addf %178, %177 : vector<8x128xf32>
    %180 = arith.divf %178, %179 : vector<8x128xf32>
    %181 = vector.extract_strided_slice %174 {offsets = [0, 128], sizes = [8, 128], strides = [1, 1]} : vector<8x512xf32> to vector<8x128xf32>
    %182 = arith.negf %181 : vector<8x128xf32>
    %183 = math.exp %182 : vector<8x128xf32>
    %cst_80 = arith.constant 1.000000e+00 : f32
    %184 = vector.broadcast %cst_80 : f32 to vector<8x128xf32>
    %185 = arith.addf %184, %183 : vector<8x128xf32>
    %186 = arith.divf %184, %185 : vector<8x128xf32>
    %187 = vector.extract_strided_slice %174 {offsets = [0, 256], sizes = [8, 128], strides = [1, 1]} : vector<8x512xf32> to vector<8x128xf32>
    %188 = math.tanh %187 : vector<8x128xf32>
    %189 = vector.extract_strided_slice %174 {offsets = [0, 384], sizes = [8, 128], strides = [1, 1]} : vector<8x512xf32> to vector<8x128xf32>
    %190 = arith.negf %189 : vector<8x128xf32>
    %191 = math.exp %190 : vector<8x128xf32>
    %cst_81 = arith.constant 1.000000e+00 : f32
    %192 = vector.broadcast %cst_81 : f32 to vector<8x128xf32>
    %193 = arith.addf %192, %191 : vector<8x128xf32>
    %194 = arith.divf %192, %193 : vector<8x128xf32>
    %c0_82 = arith.constant 0 : index
    %c0_83 = arith.constant 0 : index
    %195 = vector.load %arg6[%c0_82, %c0_83] : memref<8x128xf32, #tpu.memory_space<vmem>>, vector<8x128xf32>
    %196 = arith.mulf %186, %195 : vector<8x128xf32>
    %197 = arith.mulf %180, %188 : vector<8x128xf32>
    %198 = arith.addf %196, %197 : vector<8x128xf32>
    %199 = math.tanh %198 : vector<8x128xf32>
    %200 = arith.mulf %194, %199 : vector<8x128xf32>
    %c0_84 = arith.constant 0 : index
    %c0_85 = arith.constant 0 : index
    %201 = vector.load %arg6[%c0_84, %c0_85] : memref<8x128xf32, #tpu.memory_space<vmem>>, vector<8x128xf32>
    tpu.vector_store %arg6[%c0_84, %c0_85], %198 {strides = array<i32>} : memref<8x128xf32, #tpu.memory_space<vmem>>, vector<8x128xf32>,
    %c0_86 = arith.constant 0 : index
    %c0_87 = arith.constant 0 : index
    %202 = vector.load %arg5[%c0_86, %c0_87] : memref<8x128xf32, #tpu.memory_space<vmem>>, vector<8x128xf32>
    tpu.vector_store %arg5[%c0_86, %c0_87], %200 {strides = array<i32>} : memref<8x128xf32, #tpu.memory_space<vmem>>, vector<8x128xf32>,
    %203 = arith.truncf %200 : vector<8x128xf32> to vector<8x128xbf16>
    %204 = arith.index_cast %c4_i32 : i32 to index
    %c0_88 = arith.constant 0 : index
    %c0_89 = arith.constant 0 : index
    %205 = vector.load %arg4[%204, %c0_88, %c0_89] : memref<8x8x128xbf16, #tpu.memory_space<vmem>>, vector<1x8x128xbf16>
    %206 = vector.shape_cast %205 : vector<1x8x128xbf16> to vector<8x128xbf16>
    %207 = vector.shape_cast %203 : vector<8x128xbf16> to vector<1x8x128xbf16>
    tpu.vector_store %arg4[%204, %c0_88, %c0_89], %207 {strides = array<i32>} : memref<8x8x128xbf16, #tpu.memory_space<vmem>>, vector<1x8x128xbf16>,
    %c5_i32 = arith.constant 5 : i32
    %208 = arith.index_cast %c5_i32 : i32 to index
    %c0_90 = arith.constant 0 : index
    %c0_91 = arith.constant 0 : index
    %209 = vector.load %arg2[%208, %c0_90, %c0_91] : memref<8x8x512xf32, #tpu.memory_space<vmem>>, vector<1x8x512xf32>
    %210 = vector.shape_cast %209 : vector<1x8x512xf32> to vector<8x512xf32>
    %c0_92 = arith.constant 0 : index
    %c0_93 = arith.constant 0 : index
    %211 = vector.load %arg5[%c0_92, %c0_93] : memref<8x128xf32, #tpu.memory_space<vmem>>, vector<8x128xf32>
    %212 = arith.truncf %211 : vector<8x128xf32> to vector<8x128xbf16>
    %c0_94 = arith.constant 0 : index
    %c0_95 = arith.constant 0 : index
    %213 = vector.load %arg3[%c0_94, %c0_95] : memref<128x512xbf16, #tpu.memory_space<vmem>>, vector<128x512xbf16>
    %cst_96 = arith.constant dense<0.000000e+00> : vector<8x512xf32>
    %214 = tpu.matmul %212, %213, %cst_96 {dimension_numbers = #tpu.dot_dimension_numbers<[1], [0], [0], [1], [0, 0, 1, 1], [], []>} : vector<8x128xbf16>, vector<128x512xbf16>, vector<8x512xf32> -> vector<8x512xf32>
    %215 = arith.addf %210, %214 : vector<8x512xf32>
    %216 = vector.extract_strided_slice %215 {offsets = [0, 0], sizes = [8, 128], strides = [1, 1]} : vector<8x512xf32> to vector<8x128xf32>
    %217 = arith.negf %216 : vector<8x128xf32>
    %218 = math.exp %217 : vector<8x128xf32>
    %cst_97 = arith.constant 1.000000e+00 : f32
    %219 = vector.broadcast %cst_97 : f32 to vector<8x128xf32>
    %220 = arith.addf %219, %218 : vector<8x128xf32>
    %221 = arith.divf %219, %220 : vector<8x128xf32>
    %222 = vector.extract_strided_slice %215 {offsets = [0, 128], sizes = [8, 128], strides = [1, 1]} : vector<8x512xf32> to vector<8x128xf32>
    %223 = arith.negf %222 : vector<8x128xf32>
    %224 = math.exp %223 : vector<8x128xf32>
    %cst_98 = arith.constant 1.000000e+00 : f32
    %225 = vector.broadcast %cst_98 : f32 to vector<8x128xf32>
    %226 = arith.addf %225, %224 : vector<8x128xf32>
    %227 = arith.divf %225, %226 : vector<8x128xf32>
    %228 = vector.extract_strided_slice %215 {offsets = [0, 256], sizes = [8, 128], strides = [1, 1]} : vector<8x512xf32> to vector<8x128xf32>
    %229 = math.tanh %228 : vector<8x128xf32>
    %230 = vector.extract_strided_slice %215 {offsets = [0, 384], sizes = [8, 128], strides = [1, 1]} : vector<8x512xf32> to vector<8x128xf32>
    %231 = arith.negf %230 : vector<8x128xf32>
    %232 = math.exp %231 : vector<8x128xf32>
    %cst_99 = arith.constant 1.000000e+00 : f32
    %233 = vector.broadcast %cst_99 : f32 to vector<8x128xf32>
    %234 = arith.addf %233, %232 : vector<8x128xf32>
    %235 = arith.divf %233, %234 : vector<8x128xf32>
    %c0_100 = arith.constant 0 : index
    %c0_101 = arith.constant 0 : index
    %236 = vector.load %arg6[%c0_100, %c0_101] : memref<8x128xf32, #tpu.memory_space<vmem>>, vector<8x128xf32>
    %237 = arith.mulf %227, %236 : vector<8x128xf32>
    %238 = arith.mulf %221, %229 : vector<8x128xf32>
    %239 = arith.addf %237, %238 : vector<8x128xf32>
    %240 = math.tanh %239 : vector<8x128xf32>
    %241 = arith.mulf %235, %240 : vector<8x128xf32>
    %c0_102 = arith.constant 0 : index
    %c0_103 = arith.constant 0 : index
    %242 = vector.load %arg6[%c0_102, %c0_103] : memref<8x128xf32, #tpu.memory_space<vmem>>, vector<8x128xf32>
    tpu.vector_store %arg6[%c0_102, %c0_103], %239 {strides = array<i32>} : memref<8x128xf32, #tpu.memory_space<vmem>>, vector<8x128xf32>,
    %c0_104 = arith.constant 0 : index
    %c0_105 = arith.constant 0 : index
    %243 = vector.load %arg5[%c0_104, %c0_105] : memref<8x128xf32, #tpu.memory_space<vmem>>, vector<8x128xf32>
    tpu.vector_store %arg5[%c0_104, %c0_105], %241 {strides = array<i32>} : memref<8x128xf32, #tpu.memory_space<vmem>>, vector<8x128xf32>,
    %244 = arith.truncf %241 : vector<8x128xf32> to vector<8x128xbf16>
    %245 = arith.index_cast %c5_i32 : i32 to index
    %c0_106 = arith.constant 0 : index
    %c0_107 = arith.constant 0 : index
    %246 = vector.load %arg4[%245, %c0_106, %c0_107] : memref<8x8x128xbf16, #tpu.memory_space<vmem>>, vector<1x8x128xbf16>
    %247 = vector.shape_cast %246 : vector<1x8x128xbf16> to vector<8x128xbf16>
    %248 = vector.shape_cast %244 : vector<8x128xbf16> to vector<1x8x128xbf16>
    tpu.vector_store %arg4[%245, %c0_106, %c0_107], %248 {strides = array<i32>} : memref<8x8x128xbf16, #tpu.memory_space<vmem>>, vector<1x8x128xbf16>,
    %c6_i32 = arith.constant 6 : i32
    %249 = arith.index_cast %c6_i32 : i32 to index
    %c0_108 = arith.constant 0 : index
    %c0_109 = arith.constant 0 : index
    %250 = vector.load %arg2[%249, %c0_108, %c0_109] : memref<8x8x512xf32, #tpu.memory_space<vmem>>, vector<1x8x512xf32>
    %251 = vector.shape_cast %250 : vector<1x8x512xf32> to vector<8x512xf32>
    %c0_110 = arith.constant 0 : index
    %c0_111 = arith.constant 0 : index
    %252 = vector.load %arg5[%c0_110, %c0_111] : memref<8x128xf32, #tpu.memory_space<vmem>>, vector<8x128xf32>
    %253 = arith.truncf %252 : vector<8x128xf32> to vector<8x128xbf16>
    %c0_112 = arith.constant 0 : index
    %c0_113 = arith.constant 0 : index
    %254 = vector.load %arg3[%c0_112, %c0_113] : memref<128x512xbf16, #tpu.memory_space<vmem>>, vector<128x512xbf16>
    %cst_114 = arith.constant dense<0.000000e+00> : vector<8x512xf32>
    %255 = tpu.matmul %253, %254, %cst_114 {dimension_numbers = #tpu.dot_dimension_numbers<[1], [0], [0], [1], [0, 0, 1, 1], [], []>} : vector<8x128xbf16>, vector<128x512xbf16>, vector<8x512xf32> -> vector<8x512xf32>
    %256 = arith.addf %251, %255 : vector<8x512xf32>
    %257 = vector.extract_strided_slice %256 {offsets = [0, 0], sizes = [8, 128], strides = [1, 1]} : vector<8x512xf32> to vector<8x128xf32>
    %258 = arith.negf %257 : vector<8x128xf32>
    %259 = math.exp %258 : vector<8x128xf32>
    %cst_115 = arith.constant 1.000000e+00 : f32
    %260 = vector.broadcast %cst_115 : f32 to vector<8x128xf32>
    %261 = arith.addf %260, %259 : vector<8x128xf32>
    %262 = arith.divf %260, %261 : vector<8x128xf32>
    %263 = vector.extract_strided_slice %256 {offsets = [0, 128], sizes = [8, 128], strides = [1, 1]} : vector<8x512xf32> to vector<8x128xf32>
    %264 = arith.negf %263 : vector<8x128xf32>
    %265 = math.exp %264 : vector<8x128xf32>
    %cst_116 = arith.constant 1.000000e+00 : f32
    %266 = vector.broadcast %cst_116 : f32 to vector<8x128xf32>
    %267 = arith.addf %266, %265 : vector<8x128xf32>
    %268 = arith.divf %266, %267 : vector<8x128xf32>
    %269 = vector.extract_strided_slice %256 {offsets = [0, 256], sizes = [8, 128], strides = [1, 1]} : vector<8x512xf32> to vector<8x128xf32>
    %270 = math.tanh %269 : vector<8x128xf32>
    %271 = vector.extract_strided_slice %256 {offsets = [0, 384], sizes = [8, 128], strides = [1, 1]} : vector<8x512xf32> to vector<8x128xf32>
    %272 = arith.negf %271 : vector<8x128xf32>
    %273 = math.exp %272 : vector<8x128xf32>
    %cst_117 = arith.constant 1.000000e+00 : f32
    %274 = vector.broadcast %cst_117 : f32 to vector<8x128xf32>
    %275 = arith.addf %274, %273 : vector<8x128xf32>
    %276 = arith.divf %274, %275 : vector<8x128xf32>
    %c0_118 = arith.constant 0 : index
    %c0_119 = arith.constant 0 : index
    %277 = vector.load %arg6[%c0_118, %c0_119] : memref<8x128xf32, #tpu.memory_space<vmem>>, vector<8x128xf32>
    %278 = arith.mulf %268, %277 : vector<8x128xf32>
    %279 = arith.mulf %262, %270 : vector<8x128xf32>
    %280 = arith.addf %278, %279 : vector<8x128xf32>
    %281 = math.tanh %280 : vector<8x128xf32>
    %282 = arith.mulf %276, %281 : vector<8x128xf32>
    %c0_120 = arith.constant 0 : index
    %c0_121 = arith.constant 0 : index
    %283 = vector.load %arg6[%c0_120, %c0_121] : memref<8x128xf32, #tpu.memory_space<vmem>>, vector<8x128xf32>
    tpu.vector_store %arg6[%c0_120, %c0_121], %280 {strides = array<i32>} : memref<8x128xf32, #tpu.memory_space<vmem>>, vector<8x128xf32>,
    %c0_122 = arith.constant 0 : index
    %c0_123 = arith.constant 0 : index
    %284 = vector.load %arg5[%c0_122, %c0_123] : memref<8x128xf32, #tpu.memory_space<vmem>>, vector<8x128xf32>
    tpu.vector_store %arg5[%c0_122, %c0_123], %282 {strides = array<i32>} : memref<8x128xf32, #tpu.memory_space<vmem>>, vector<8x128xf32>,
    %285 = arith.truncf %282 : vector<8x128xf32> to vector<8x128xbf16>
    %286 = arith.index_cast %c6_i32 : i32 to index
    %c0_124 = arith.constant 0 : index
    %c0_125 = arith.constant 0 : index
    %287 = vector.load %arg4[%286, %c0_124, %c0_125] : memref<8x8x128xbf16, #tpu.memory_space<vmem>>, vector<1x8x128xbf16>
    %288 = vector.shape_cast %287 : vector<1x8x128xbf16> to vector<8x128xbf16>
    %289 = vector.shape_cast %285 : vector<8x128xbf16> to vector<1x8x128xbf16>
    tpu.vector_store %arg4[%286, %c0_124, %c0_125], %289 {strides = array<i32>} : memref<8x8x128xbf16, #tpu.memory_space<vmem>>, vector<1x8x128xbf16>,
    %c7_i32 = arith.constant 7 : i32
    %290 = arith.index_cast %c7_i32 : i32 to index
    %c0_126 = arith.constant 0 : index
    %c0_127 = arith.constant 0 : index
    %291 = vector.load %arg2[%290, %c0_126, %c0_127] : memref<8x8x512xf32, #tpu.memory_space<vmem>>, vector<1x8x512xf32>
    %292 = vector.shape_cast %291 : vector<1x8x512xf32> to vector<8x512xf32>
    %c0_128 = arith.constant 0 : index
    %c0_129 = arith.constant 0 : index
    %293 = vector.load %arg5[%c0_128, %c0_129] : memref<8x128xf32, #tpu.memory_space<vmem>>, vector<8x128xf32>
    %294 = arith.truncf %293 : vector<8x128xf32> to vector<8x128xbf16>
    %c0_130 = arith.constant 0 : index
    %c0_131 = arith.constant 0 : index
    %295 = vector.load %arg3[%c0_130, %c0_131] : memref<128x512xbf16, #tpu.memory_space<vmem>>, vector<128x512xbf16>
    %cst_132 = arith.constant dense<0.000000e+00> : vector<8x512xf32>
    %296 = tpu.matmul %294, %295, %cst_132 {dimension_numbers = #tpu.dot_dimension_numbers<[1], [0], [0], [1], [0, 0, 1, 1], [], []>} : vector<8x128xbf16>, vector<128x512xbf16>, vector<8x512xf32> -> vector<8x512xf32>
    %297 = arith.addf %292, %296 : vector<8x512xf32>
    %298 = vector.extract_strided_slice %297 {offsets = [0, 0], sizes = [8, 128], strides = [1, 1]} : vector<8x512xf32> to vector<8x128xf32>
    %299 = arith.negf %298 : vector<8x128xf32>
    %300 = math.exp %299 : vector<8x128xf32>
    %cst_133 = arith.constant 1.000000e+00 : f32
    %301 = vector.broadcast %cst_133 : f32 to vector<8x128xf32>
    %302 = arith.addf %301, %300 : vector<8x128xf32>
    %303 = arith.divf %301, %302 : vector<8x128xf32>
    %304 = vector.extract_strided_slice %297 {offsets = [0, 128], sizes = [8, 128], strides = [1, 1]} : vector<8x512xf32> to vector<8x128xf32>
    %305 = arith.negf %304 : vector<8x128xf32>
    %306 = math.exp %305 : vector<8x128xf32>
    %cst_134 = arith.constant 1.000000e+00 : f32
    %307 = vector.broadcast %cst_134 : f32 to vector<8x128xf32>
    %308 = arith.addf %307, %306 : vector<8x128xf32>
    %309 = arith.divf %307, %308 : vector<8x128xf32>
    %310 = vector.extract_strided_slice %297 {offsets = [0, 256], sizes = [8, 128], strides = [1, 1]} : vector<8x512xf32> to vector<8x128xf32>
    %311 = math.tanh %310 : vector<8x128xf32>
    %312 = vector.extract_strided_slice %297 {offsets = [0, 384], sizes = [8, 128], strides = [1, 1]} : vector<8x512xf32> to vector<8x128xf32>
    %313 = arith.negf %312 : vector<8x128xf32>
    %314 = math.exp %313 : vector<8x128xf32>
    %cst_135 = arith.constant 1.000000e+00 : f32
    %315 = vector.broadcast %cst_135 : f32 to vector<8x128xf32>
    %316 = arith.addf %315, %314 : vector<8x128xf32>
    %317 = arith.divf %315, %316 : vector<8x128xf32>
    %c0_136 = arith.constant 0 : index
    %c0_137 = arith.constant 0 : index
    %318 = vector.load %arg6[%c0_136, %c0_137] : memref<8x128xf32, #tpu.memory_space<vmem>>, vector<8x128xf32>
    %319 = arith.mulf %309, %318 : vector<8x128xf32>
    %320 = arith.mulf %303, %311 : vector<8x128xf32>
    %321 = arith.addf %319, %320 : vector<8x128xf32>
    %322 = math.tanh %321 : vector<8x128xf32>
    %323 = arith.mulf %317, %322 : vector<8x128xf32>
    %c0_138 = arith.constant 0 : index
    %c0_139 = arith.constant 0 : index
    %324 = vector.load %arg6[%c0_138, %c0_139] : memref<8x128xf32, #tpu.memory_space<vmem>>, vector<8x128xf32>
    tpu.vector_store %arg6[%c0_138, %c0_139], %321 {strides = array<i32>} : memref<8x128xf32, #tpu.memory_space<vmem>>, vector<8x128xf32>,
    %c0_140 = arith.constant 0 : index
    %c0_141 = arith.constant 0 : index
    %325 = vector.load %arg5[%c0_140, %c0_141] : memref<8x128xf32, #tpu.memory_space<vmem>>, vector<8x128xf32>
    tpu.vector_store %arg5[%c0_140, %c0_141], %323 {strides = array<i32>} : memref<8x128xf32, #tpu.memory_space<vmem>>, vector<8x128xf32>,
    %326 = arith.truncf %323 : vector<8x128xf32> to vector<8x128xbf16>
    %327 = arith.index_cast %c7_i32 : i32 to index
    %c0_142 = arith.constant 0 : index
    %c0_143 = arith.constant 0 : index
    %328 = vector.load %arg4[%327, %c0_142, %c0_143] : memref<8x8x128xbf16, #tpu.memory_space<vmem>>, vector<1x8x128xbf16>
    %329 = vector.shape_cast %328 : vector<1x8x128xbf16> to vector<8x128xbf16>
    %330 = vector.shape_cast %326 : vector<8x128xbf16> to vector<1x8x128xbf16>
    tpu.vector_store %arg4[%327, %c0_142, %c0_143], %330 {strides = array<i32>} : memref<8x8x128xbf16, #tpu.memory_space<vmem>>, vector<1x8x128xbf16>,
    %c8_i32 = arith.constant 8 : i32
    return
  }
  func.func @transform_0(%arg0: i32, %arg1: i32) -> (i32, i32, i32) {
    %c0_i32 = arith.constant 0 : i32
    %c0_i32_0 = arith.constant 0 : i32
    return %arg1, %arg0, %c0_i32 : i32, i32, i32
  }
  func.func @transform_1(%arg0: i32, %arg1: i32) -> (i32, i32) {
    %c0_i32 = arith.constant 0 : i32
    %c0_i32_0 = arith.constant 0 : i32
    %c0_i32_1 = arith.constant 0 : i32
    return %c0_i32, %c0_i32_0 : i32, i32
  }
  func.func @transform_2(%arg0: i32, %arg1: i32) -> (i32, i32, i32) {
    %c0_i32 = arith.constant 0 : i32
    %c0_i32_0 = arith.constant 0 : i32
    return %arg1, %arg0, %c0_i32 : i32, i32, i32
  }
}

</mosaic_0001>

<llo_original>
// kernel: decoder_lstm_forward.1
$region0: #{decoder_lstm_forward.1}
  #allocation0 [shape = 'u32[]', space=smem, size = 0x4, offset = 0x4, fixed_abs, tag = 'smem constant byte address 0x4 - core index']
  #allocation1 [shape = 'u32[144,128]{1,0:T(1,128)}', space=vmem, size = 0x12000, scoped, tag = 'internal scratch']
  #allocation2 [shape = 'f32[8,128]{1,0:T(8,128)}', space=vmem, size = 0x1000, scoped, tag = 'scratch operand']
  #allocation3 [shape = 'f32[8,128]{1,0:T(8,128)}', space=vmem, size = 0x1000, scoped, tag = 'scratch operand']
  %s0 = inlined_call_operand.vmem [shape: f32[8,8,512], index: 0, kind: input, shape index: {}]
  %s1 = inlined_call_operand.vmem [shape: bf16[128,512], index: 1, kind: input, shape index: {}]
  %s2 = inlined_call_operand.vmem [shape: bf16[8,8,128], index: 2, kind: output, shape index: {}]
  %s3 = sld [smem:[#allocation0]]
  $region22: #{decoder_lstm_forward.1} parent=0
    _
  %s5 = ssub.s32 1, %s3
  %s6 = scalar_select 0, %s5, %s3
  // Predicated region
  $region2: #{decoder_lstm_forward.1} parent=0 // pred_check
    _
  $region3: #{decoder_lstm_forward.1} parent=0 // pred_check_branch
    %8 = sbr.rel (0) target = $region5
  $region4: #{decoder_lstm_forward.1} parent=0 // pred_region
    _
  $region5: #{decoder_lstm_forward.1} parent=0 // pred_fallthru
    _
  // Predicated region
  $region6: #{decoder_lstm_forward.1} parent=0 // pred_check
    _
  $region7: #{decoder_lstm_forward.1} parent=0 // pred_check_branch
    %10 = sbr.rel (0) target = $region9
  $region8: #{decoder_lstm_forward.1} parent=0 // pred_region
    _
  $region9: #{decoder_lstm_forward.1} parent=0 // pred_fallthru
    _
  %p12 = scmp.eq.s32.totalorder 0, 0
  // Predicated region
  $region10: #{decoder_lstm_forward.1} parent=0 // pred_check
    %p13 = pneg %p12
  $region11: #{decoder_lstm_forward.1} parent=0 // pred_check_branch
    %15 = sbr.rel (%p13) target = $region13
  $region12: #{decoder_lstm_forward.1} parent=0 // pred_region
    %16 = vst [vmem:[#allocation2] sm:$0xff] 0.0
    %17 = vst [vmem:[#allocation3] sm:$0xff] 0.0
  $region13: #{decoder_lstm_forward.1} parent=0 // pred_fallthru
    _
  %v18 = vld [vmem:[%s0] sm:$0xff]
  %v19 = vld [vmem:[%s0 + $0x8] sm:$0xff]
  %v20 = vld [vmem:[%s0 + $0x10] sm:$0xff]
  %v21 = vld [vmem:[%s0 + $0x18] sm:$0xff]
  %v22 = vld [vmem:[#allocation2] sm:$0xff]
  %v23 = vpack.c.bf16 %v22, %v22
  %v24 = vld [vmem:[%s1] sm:$0xff]
  %v25 = vld [vmem:[%s1 + $0x8] sm:$0xff]
  %v26 = vld [vmem:[%s1 + $0x10] sm:$0xff]
  %v27 = vld [vmem:[%s1 + $0x18] sm:$0xff]
  %v28 = vld [vmem:[%s1 + $0x20] sm:$0xff]
  %v29 = vld [vmem:[%s1 + $0x28] sm:$0xff]
  %v30 = vld [vmem:[%s1 + $0x30] sm:$0xff]
  %v31 = vld [vmem:[%s1 + $0x38] sm:$0xff]
  %v32 = vld [vmem:[%s1 + $0x40] sm:$0xff]
  %v33 = vld [vmem:[%s1 + $0x48] sm:$0xff]
  %v34 = vld [vmem:[%s1 + $0x50] sm:$0xff]
  %v35 = vld [vmem:[%s1 + $0x58] sm:$0xff]
  %v36 = vld [vmem:[%s1 + $0x60] sm:$0xff]
  %v37 = vld [vmem:[%s1 + $0x68] sm:$0xff]
  %v38 = vld [vmem:[%s1 + $0x70] sm:$0xff]
  %v39 = vld [vmem:[%s1 + $0x78] sm:$0xff]
  %v40 = vld [vmem:[%s1 + $0x80] sm:$0xff]
  %v41 = vld [vmem:[%s1 + $0x88] sm:$0xff]
  %v42 = vld [vmem:[%s1 + $0x90] sm:$0xff]
  %v43 = vld [vmem:[%s1 + $0x98] sm:$0xff]
  %v44 = vld [vmem:[%s1 + $0xa0] sm:$0xff]
  %v45 = vld [vmem:[%s1 + $0xa8] sm:$0xff]
  %v46 = vld [vmem:[%s1 + $0xb0] sm:$0xff]
  %v47 = vld [vmem:[%s1 + $0xb8] sm:$0xff]
  %v48 = vld [vmem:[%s1 + $0xc0] sm:$0xff]
  %v49 = vld [vmem:[%s1 + $0xc8] sm:$0xff]
  %v50 = vld [vmem:[%s1 + $0xd0] sm:$0xff]
  %v51 = vld [vmem:[%s1 + $0xd8] sm:$0xff]
  %v52 = vld [vmem:[%s1 + $0xe0] sm:$0xff]
  %v53 = vld [vmem:[%s1 + $0xe8] sm:$0xff]
  %v54 = vld [vmem:[%s1 + $0xf0] sm:$0xff]
  %v55 = vld [vmem:[%s1 + $0xf8] sm:$0xff]
  %v88 = vunpack.c.l.b16 %v24
  %v89 = vunpack.c.h.b16 %v24
  %v90 = vunpack.c.l.b16 %v25
  %v91 = vunpack.c.h.b16 %v25
  %v92 = vunpack.c.l.b16 %v26
  %v93 = vunpack.c.h.b16 %v26
  %v94 = vunpack.c.l.b16 %v27
  %v95 = vunpack.c.h.b16 %v27
  %v96 = vunpack.c.l.b16 %v28
  %v97 = vunpack.c.h.b16 %v28
  %v98 = vunpack.c.l.b16 %v29
  %v99 = vunpack.c.h.b16 %v29
  %v100 = vunpack.c.l.b16 %v30
  %v101 = vunpack.c.h.b16 %v30
  %v102 = vunpack.c.l.b16 %v31
  %v103 = vunpack.c.h.b16 %v31
  %v104 = vunpack.c.l.b16 %v32
  %v105 = vunpack.c.h.b16 %v32
  %v106 = vunpack.c.l.b16 %v33
  %v107 = vunpack.c.h.b16 %v33
  %v108 = vunpack.c.l.b16 %v34
  %v109 = vunpack.c.h.b16 %v34
  %v110 = vunpack.c.l.b16 %v35
  %v111 = vunpack.c.h.b16 %v35
  %v112 = vunpack.c.l.b16 %v36
  %v113 = vunpack.c.h.b16 %v36
  %v114 = vunpack.c.l.b16 %v37
  %v115 = vunpack.c.h.b16 %v37
  %v116 = vunpack.c.l.b16 %v38
  %v117 = vunpack.c.h.b16 %v38
  %v118 = vunpack.c.l.b16 %v39
  %v119 = vunpack.c.h.b16 %v39
  %v120 = vunpack.c.l.b16 %v40
  %v121 = vunpack.c.h.b16 %v40
  %v122 = vunpack.c.l.b16 %v41
  %v123 = vunpack.c.h.b16 %v41
  %v124 = vunpack.c.l.b16 %v42
  %v125 = vunpack.c.h.b16 %v42
  %v126 = vunpack.c.l.b16 %v43
  %v127 = vunpack.c.h.b16 %v43
  %v128 = vunpack.c.l.b16 %v44
  %v129 = vunpack.c.h.b16 %v44
  %v130 = vunpack.c.l.b16 %v45
  %v131 = vunpack.c.h.b16 %v45
  %v132 = vunpack.c.l.b16 %v46
  %v133 = vunpack.c.h.b16 %v46
  %v134 = vunpack.c.l.b16 %v47
  %v135 = vunpack.c.h.b16 %v47
  %v136 = vunpack.c.l.b16 %v48
  %v137 = vunpack.c.h.b16 %v48
  %v138 = vunpack.c.l.b16 %v49
  %v139 = vunpack.c.h.b16 %v49
  %v140 = vunpack.c.l.b16 %v50
  %v141 = vunpack.c.h.b16 %v50
  %v142 = vunpack.c.l.b16 %v51
  %v143 = vunpack.c.h.b16 %v51
  %v144 = vunpack.c.l.b16 %v52
  %v145 = vunpack.c.h.b16 %v52
  %v146 = vunpack.c.l.b16 %v53
  %v147 = vunpack.c.h.b16 %v53
  %v148 = vunpack.c.l.b16 %v54
  %v149 = vunpack.c.h.b16 %v54
  %v150 = vunpack.c.l.b16 %v55
  %v151 = vunpack.c.h.b16 %v55
  %v152 = vpack.c.b16 %v92, %v88
  %v153 = vpack.c.b16 %v93, %v89
  %v154 = vpack.c.b16 %v94, %v90
  %v155 = vpack.c.b16 %v95, %v91
  %v156 = vpack.c.b16 %v100, %v96
  %v157 = vpack.c.b16 %v101, %v97
  %v158 = vpack.c.b16 %v102, %v98
  %v159 = vpack.c.b16 %v103, %v99
  %v160 = vpack.c.b16 %v108, %v104
  %v161 = vpack.c.b16 %v109, %v105
  %v162 = vpack.c.b16 %v110, %v106
  %v163 = vpack.c.b16 %v111, %v107
  %v164 = vpack.c.b16 %v116, %v112
  %v165 = vpack.c.b16 %v117, %v113
  %v166 = vpack.c.b16 %v118, %v114
  %v167 = vpack.c.b16 %v119, %v115
  %v168 = vpack.c.b16 %v124, %v120
  %v169 = vpack.c.b16 %v125, %v121
  %v170 = vpack.c.b16 %v126, %v122
  %v171 = vpack.c.b16 %v127, %v123
  %v172 = vpack.c.b16 %v132, %v128
  %v173 = vpack.c.b16 %v133, %v129
  %v174 = vpack.c.b16 %v134, %v130
  %v175 = vpack.c.b16 %v135, %v131
  %v176 = vpack.c.b16 %v140, %v136
  %v177 = vpack.c.b16 %v141, %v137
  %v178 = vpack.c.b16 %v142, %v138
  %v179 = vpack.c.b16 %v143, %v139
  %v180 = vpack.c.b16 %v148, %v144
  %v181 = vpack.c.b16 %v149, %v145
  %v182 = vpack.c.b16 %v150, %v146
  %v183 = vpack.c.b16 %v151, %v147
  %216 = vmatprep.subr.bf16.mxu0 %v153
  %217 = vmatpush1.bf16.msra.mxu0 %v152
  %218 = vmatprep.subr.bf16.mxu0 %v157
  %219 = vmatpush1.bf16.msra.mxu0 %v156
  %220 = vmatprep.subr.bf16.mxu0 %v161
  %221 = vmatpush1.bf16.msra.mxu0 %v160
  %222 = vmatprep.subr.bf16.mxu0 %v165
  %223 = vmatpush1.bf16.msra.mxu0 %v164
  %224 = vmatprep.subr.bf16.mxu0 %v169
  %225 = vmatpush1.bf16.msra.mxu0 %v168
  %226 = vmatprep.subr.bf16.mxu0 %v173
  %227 = vmatpush1.bf16.msra.mxu0 %v172
  %228 = vmatprep.subr.bf16.mxu0 %v177
  %229 = vmatpush1.bf16.msra.mxu0 %v176
  %230 = vmatprep.subr.bf16.mxu0 %v181
  %231 = vmatpush1.bf16.msra.mxu0 %v180
  %232 = vmatprep.subr.bf16.mxu0 0
  %233 = vmatpush1.bf16.msra.mxu0 0
  %234 = vmatprep.subr.bf16.mxu0 0
  %235 = vmatpush1.bf16.msra.mxu0 0
  %236 = vmatprep.subr.bf16.mxu0 0
  %237 = vmatpush1.bf16.msra.mxu0 0
  %238 = vmatprep.subr.bf16.mxu0 0
  %239 = vmatpush1.bf16.msra.mxu0 0
  %240 = vmatprep.subr.bf16.mxu0 0
  %241 = vmatpush1.bf16.msra.mxu0 0
  %242 = vmatprep.subr.bf16.mxu0 0
  %243 = vmatpush1.bf16.msra.mxu0 0
  %244 = vmatprep.subr.bf16.mxu0 0
  %245 = vmatpush1.bf16.msra.mxu0 0
  %246 = vmatprep.subr.bf16.mxu0 0
  %247 = vmatpush1.bf16.msra.mxu0 0
  %248 = vmatprep.mubr.bf16.mxu0 0
  %249 = vmatmul.mubr.bf16.gmra.mrb[0].mxu0 %v23
  %v250 = vpop.f32.mrb[0].mxu0
  %v251 = vadd.f32 0.0, %v250
  %v252 = vpop.f32.mrb[0].mxu0
  %v253 = vadd.f32 0.0, %v252
  %v254 = vpop.f32.mrb[0].mxu0
  %v255 = vpop.f32.mrb[0].mxu0
  %256 = vdwg.mxu0
  %257 = vmatprep.subr.bf16.mxu0 %v155
  %258 = vmatpush1.bf16.msra.mxu0 %v154
  %259 = vmatprep.subr.bf16.mxu0 %v159
  %260 = vmatpush1.bf16.msra.mxu0 %v158
  %261 = vmatprep.subr.bf16.mxu0 %v163
  %262 = vmatpush1.bf16.msra.mxu0 %v162
  %263 = vmatprep.subr.bf16.mxu0 %v167
  %264 = vmatpush1.bf16.msra.mxu0 %v166
  %265 = vmatprep.subr.bf16.mxu0 %v171
  %266 = vmatpush1.bf16.msra.mxu0 %v170
  %267 = vmatprep.subr.bf16.mxu0 %v175
  %268 = vmatpush1.bf16.msra.mxu0 %v174
  %269 = vmatprep.subr.bf16.mxu0 %v179
  %270 = vmatpush1.bf16.msra.mxu0 %v178
  %271 = vmatprep.subr.bf16.mxu0 %v183
  %272 = vmatpush1.bf16.msra.mxu0 %v182
  %273 = vmatprep.subr.bf16.mxu0 0
  %274 = vmatpush1.bf16.msra.mxu0 0
  %275 = vmatprep.subr.bf16.mxu0 0
  %276 = vmatpush1.bf16.msra.mxu0 0
  %277 = vmatprep.subr.bf16.mxu0 0
  %278 = vmatpush1.bf16.msra.mxu0 0
  %279 = vmatprep.subr.bf16.mxu0 0
  %280 = vmatpush1.bf16.msra.mxu0 0
  %281 = vmatprep.subr.bf16.mxu0 0
  %282 = vmatpush1.bf16.msra.mxu0 0
  %283 = vmatprep.subr.bf16.mxu0 0
  %284 = vmatpush1.bf16.msra.mxu0 0
  %285 = vmatprep.subr.bf16.mxu0 0
  %286 = vmatpush1.bf16.msra.mxu0 0
  %287 = vmatprep.subr.bf16.mxu0 0
  %288 = vmatpush1.bf16.msra.mxu0 0
  %289 = vmatprep.mubr.bf16.mxu0 0
  %290 = vmatmul.mubr.bf16.gmra.mrb[0].mxu0 %v23
  %v291 = vpop.f32.mrb[0].mxu0
  %v292 = vadd.f32 0.0, %v291
  %v293 = vpop.f32.mrb[0].mxu0
  %v294 = vadd.f32 0.0, %v293
  %v295 = vpop.f32.mrb[0].mxu0
  %v296 = vpop.f32.mrb[0].mxu0
  %297 = vdwg.mxu0
  %v298 = vadd.f32 %v18, %v251
  %v299 = vadd.f32 %v19, %v253
  %v300 = vadd.f32 %v20, %v292
  %v301 = vadd.f32 %v21, %v294
  %v302 = vxor.u32 %v298, 2147483648
  %v303 = vmul.f32 %v302, 1.442695
  %v304 = vpow.pop %v303
  %v305 = vadd.f32 %v304, 1.0
  %v306 = vrcp.pop %v305
  %v307 = vmul.f32 1.0, %v306
  %v308 = vxor.u32 %v299, 2147483648
  %v309 = vmul.f32 %v308, 1.442695
  %v310 = vpow.pop %v309
  %v311 = vadd.f32 %v310, 1.0
  %v312 = vrcp.pop %v311
  %v313 = vmul.f32 1.0, %v312
  %v314 = vtanh.pop %v300
  %v315 = vxor.u32 %v301, 2147483648
  %v316 = vmul.f32 %v315, 1.442695
  %v317 = vpow.pop %v316
  %v318 = vadd.f32 %v317, 1.0
  %v319 = vrcp.pop %v318
  %v320 = vmul.f32 1.0, %v319
  %v321 = vld [vmem:[#allocation3] sm:$0xff]
  %v322 = vmul.f32 %v313, %v321
  %v323 = vmul.f32 %v307, %v314
  %v324 = vadd.f32 %v322, %v323
  %v325 = vtanh.pop %v324
  %v326 = vmul.f32 %v320, %v325
  %327 = vst [vmem:[#allocation3] sm:$0xff] %v324
  %328 = vst [vmem:[#allocation2] sm:$0xff] %v326
  %v329 = vpack.c.bf16 %v326, %v326
  %330 = vst [vmem:[%s2] sm:$0xf] %v329
  %s331 = scalar_lea.vmem %s0, 32
  %v332 = vld [vmem:[%s331] sm:$0xff]
  %v333 = vld [vmem:[%s331 + $0x8] sm:$0xff]
  %v334 = vld [vmem:[%s331 + $0x10] sm:$0xff]
  %v335 = vld [vmem:[%s331 + $0x18] sm:$0xff]
  %v336 = vld [vmem:[#allocation2] sm:$0xff]
  %v337 = vpack.c.bf16 %v336, %v336
  %v338 = vld [vmem:[%s1] sm:$0xff]
  %v339 = vld [vmem:[%s1 + $0x8] sm:$0xff]
  %v340 = vld [vmem:[%s1 + $0x10] sm:$0xff]
  %v341 = vld [vmem:[%s1 + $0x18] sm:$0xff]
  %v342 = vld [vmem:[%s1 + $0x20] sm:$0xff]
  %v343 = vld [vmem:[%s1 + $0x28] sm:$0xff]
  %v344 = vld [vmem:[%s1 + $0x30] sm:$0xff]
  %v345 = vld [vmem:[%s1 + $0x38] sm:$0xff]
  %v346 = vld [vmem:[%s1 + $0x40] sm:$0xff]
  %v347 = vld [vmem:[%s1 + $0x48] sm:$0xff]
  %v348 = vld [vmem:[%s1 + $0x50] sm:$0xff]
  %v349 = vld [vmem:[%s1 + $0x58] sm:$0xff]
  %v350 = vld [vmem:[%s1 + $0x60] sm:$0xff]
  %v351 = vld [vmem:[%s1 + $0x68] sm:$0xff]
  %v352 = vld [vmem:[%s1 + $0x70] sm:$0xff]
  %v353 = vld [vmem:[%s1 + $0x78] sm:$0xff]
  %v354 = vld [vmem:[%s1 + $0x80] sm:$0xff]
  %v355 = vld [vmem:[%s1 + $0x88] sm:$0xff]
  %v356 = vld [vmem:[%s1 + $0x90] sm:$0xff]
  %v357 = vld [vmem:[%s1 + $0x98] sm:$0xff]
  %v358 = vld [vmem:[%s1 + $0xa0] sm:$0xff]
  %v359 = vld [vmem:[%s1 + $0xa8] sm:$0xff]
  %v360 = vld [vmem:[%s1 + $0xb0] sm:$0xff]
  %v361 = vld [vmem:[%s1 + $0xb8] sm:$0xff]
  %v362 = vld [vmem:[%s1 + $0xc0] sm:$0xff]
  %v363 = vld [vmem:[%s1 + $0xc8] sm:$0xff]
  %v364 = vld [vmem:[%s1 + $0xd0] sm:$0xff]
  %v365 = vld [vmem:[%s1 + $0xd8] sm:$0xff]
  %v366 = vld [vmem:[%s1 + $0xe0] sm:$0xff]
  %v367 = vld [vmem:[%s1 + $0xe8] sm:$0xff]
  %v368 = vld [vmem:[%s1 + $0xf0] sm:$0xff]
  %v369 = vld [vmem:[%s1 + $0xf8] sm:$0xff]
  %v402 = vunpack.c.l.b16 %v338
  %v403 = vunpack.c.h.b16 %v338
  %v404 = vunpack.c.l.b16 %v339
  %v405 = vunpack.c.h.b16 %v339
  %v406 = vunpack.c.l.b16 %v340
  %v407 = vunpack.c.h.b16 %v340
  %v408 = vunpack.c.l.b16 %v341
  %v409 = vunpack.c.h.b16 %v341
  %v410 = vunpack.c.l.b16 %v342
  %v411 = vunpack.c.h.b16 %v342
  %v412 = vunpack.c.l.b16 %v343
  %v413 = vunpack.c.h.b16 %v343
  %v414 = vunpack.c.l.b16 %v344
  %v415 = vunpack.c.h.b16 %v344
  %v416 = vunpack.c.l.b16 %v345
  %v417 = vunpack.c.h.b16 %v345
  %v418 = vunpack.c.l.b16 %v346
  %v419 = vunpack.c.h.b16 %v346
  %v420 = vunpack.c.l.b16 %v347
  %v421 = vunpack.c.h.b16 %v347
  %v422 = vunpack.c.l.b16 %v348
  %v423 = vunpack.c.h.b16 %v348
  %v424 = vunpack.c.l.b16 %v349
  %v425 = vunpack.c.h.b16 %v349
  %v426 = vunpack.c.l.b16 %v350
  %v427 = vunpack.c.h.b16 %v350
  %v428 = vunpack.c.l.b16 %v351
  %v429 = vunpack.c.h.b16 %v351
  %v430 = vunpack.c.l.b16 %v352
  %v431 = vunpack.c.h.b16 %v352
  %v432 = vunpack.c.l.b16 %v353
  %v433 = vunpack.c.h.b16 %v353
  %v434 = vunpack.c.l.b16 %v354
  %v435 = vunpack.c.h.b16 %v354
  %v436 = vunpack.c.l.b16 %v355
  %v437 = vunpack.c.h.b16 %v355
  %v438 = vunpack.c.l.b16 %v356
  %v439 = vunpack.c.h.b16 %v356
  %v440 = vunpack.c.l.b16 %v357
  %v441 = vunpack.c.h.b16 %v357
  %v442 = vunpack.c.l.b16 %v358
  %v443 = vunpack.c.h.b16 %v358
  %v444 = vunpack.c.l.b16 %v359
  %v445 = vunpack.c.h.b16 %v359
  %v446 = vunpack.c.l.b16 %v360
  %v447 = vunpack.c.h.b16 %v360
  %v448 = vunpack.c.l.b16 %v361
  %v449 = vunpack.c.h.b16 %v361
  %v450 = vunpack.c.l.b16 %v362
  %v451 = vunpack.c.h.b16 %v362
  %v452 = vunpack.c.l.b16 %v363
  %v453 = vunpack.c.h.b16 %v363
  %v454 = vunpack.c.l.b16 %v364
  %v455 = vunpack.c.h.b16 %v364
  %v456 = vunpack.c.l.b16 %v365
  %v457 = vunpack.c.h.b16 %v365
  %v458 = vunpack.c.l.b16 %v366
  %v459 = vunpack.c.h.b16 %v366
  %v460 = vunpack.c.l.b16 %v367
  %v461 = vunpack.c.h.b16 %v367
  %v462 = vunpack.c.l.b16 %v368
  %v463 = vunpack.c.h.b16 %v368
  %v464 = vunpack.c.l.b16 %v369
  %v465 = vunpack.c.h.b16 %v369
  %v466 = vpack.c.b16 %v406, %v402
  %v467 = vpack.c.b16 %v407, %v403
  %v468 = vpack.c.b16 %v408, %v404
  %v469 = vpack.c.b16 %v409, %v405
  %v470 = vpack.c.b16 %v414, %v410
  %v471 = vpack.c.b16 %v415, %v411
  %v472 = vpack.c.b16 %v416, %v412
  %v473 = vpack.c.b16 %v417, %v413
  %v474 = vpack.c.b16 %v422, %v418
  %v475 = vpack.c.b16 %v423, %v419
  %v476 = vpack.c.b16 %v424, %v420
  %v477 = vpack.c.b16 %v425, %v421
  %v478 = vpack.c.b16 %v430, %v426
  %v479 = vpack.c.b16 %v431, %v427
  %v480 = vpack.c.b16 %v432, %v428
  %v481 = vpack.c.b16 %v433, %v429
  %v482 = vpack.c.b16 %v438, %v434
  %v483 = vpack.c.b16 %v439, %v435
  %v484 = vpack.c.b16 %v440, %v436
  %v485 = vpack.c.b16 %v441, %v437
  %v486 = vpack.c.b16 %v446, %v442
  %v487 = vpack.c.b16 %v447, %v443
  %v488 = vpack.c.b16 %v448, %v444
  %v489 = vpack.c.b16 %v449, %v445
  %v490 = vpack.c.b16 %v454, %v450
  %v491 = vpack.c.b16 %v455, %v451
  %v492 = vpack.c.b16 %v456, %v452
  %v493 = vpack.c.b16 %v457, %v453
  %v494 = vpack.c.b16 %v462, %v458
  %v495 = vpack.c.b16 %v463, %v459
  %v496 = vpack.c.b16 %v464, %v460
  %v497 = vpack.c.b16 %v465, %v461
  %530 = vmatprep.subr.bf16.mxu0 %v467
  %531 = vmatpush1.bf16.msra.mxu0 %v466
  %532 = vmatprep.subr.bf16.mxu0 %v471
  %533 = vmatpush1.bf16.msra.mxu0 %v470
  %534 = vmatprep.subr.bf16.mxu0 %v475
  %535 = vmatpush1.bf16.msra.mxu0 %v474
  %536 = vmatprep.subr.bf16.mxu0 %v479
  %537 = vmatpush1.bf16.msra.mxu0 %v478
  %538 = vmatprep.subr.bf16.mxu0 %v483
  %539 = vmatpush1.bf16.msra.mxu0 %v482
  %540 = vmatprep.subr.bf16.mxu0 %v487
  %541 = vmatpush1.bf16.msra.mxu0 %v486
  %542 = vmatprep.subr.bf16.mxu0 %v491
  %543 = vmatpush1.bf16.msra.mxu0 %v490
  %544 = vmatprep.subr.bf16.mxu0 %v495
  %545 = vmatpush1.bf16.msra.mxu0 %v494
  %546 = vmatprep.subr.bf16.mxu0 0
  %547 = vmatpush1.bf16.msra.mxu0 0
  %548 = vmatprep.subr.bf16.mxu0 0
  %549 = vmatpush1.bf16.msra.mxu0 0
  %550 = vmatprep.subr.bf16.mxu0 0
  %551 = vmatpush1.bf16.msra.mxu0 0
  %552 = vmatprep.subr.bf16.mxu0 0
  %553 = vmatpush1.bf16.msra.mxu0 0
  %554 = vmatprep.subr.bf16.mxu0 0
  %555 = vmatpush1.bf16.msra.mxu0 0
  %556 = vmatprep.subr.bf16.mxu0 0
  %557 = vmatpush1.bf16.msra.mxu0 0
  %558 = vmatprep.subr.bf16.mxu0 0
  %559 = vmatpush1.bf16.msra.mxu0 0
  %560 = vmatprep.subr.bf16.mxu0 0
  %561 = vmatpush1.bf16.msra.mxu0 0
  %562 = vmatprep.mubr.bf16.mxu0 0
  %563 = vmatmul.mubr.bf16.gmra.mrb[0].mxu0 %v337
  %v564 = vpop.f32.mrb[0].mxu0
  %v565 = vadd.f32 0.0, %v564
  %v566 = vpop.f32.mrb[0].mxu0
  %v567 = vadd.f32 0.0, %v566
  %v568 = vpop.f32.mrb[0].mxu0
  %v569 = vpop.f32.mrb[0].mxu0
  %570 = vdwg.mxu0
  %571 = vmatprep.subr.bf16.mxu0 %v469
  %572 = vmatpush1.bf16.msra.mxu0 %v468
  %573 = vmatprep.subr.bf16.mxu0 %v473
  %574 = vmatpush1.bf16.msra.mxu0 %v472
  %575 = vmatprep.subr.bf16.mxu0 %v477
  %576 = vmatpush1.bf16.msra.mxu0 %v476
  %577 = vmatprep.subr.bf16.mxu0 %v481
  %578 = vmatpush1.bf16.msra.mxu0 %v480
  %579 = vmatprep.subr.bf16.mxu0 %v485
  %580 = vmatpush1.bf16.msra.mxu0 %v484
  %581 = vmatprep.subr.bf16.mxu0 %v489
  %582 = vmatpush1.bf16.msra.mxu0 %v488
  %583 = vmatprep.subr.bf16.mxu0 %v493
  %584 = vmatpush1.bf16.msra.mxu0 %v492
  %585 = vmatprep.subr.bf16.mxu0 %v497
  %586 = vmatpush1.bf16.msra.mxu0 %v496
  %587 = vmatprep.subr.bf16.mxu0 0
  %588 = vmatpush1.bf16.msra.mxu0 0
  %589 = vmatprep.subr.bf16.mxu0 0
  %590 = vmatpush1.bf16.msra.mxu0 0
  %591 = vmatprep.subr.bf16.mxu0 0
  %592 = vmatpush1.bf16.msra.mxu0 0
  %593 = vmatprep.subr.bf16.mxu0 0
  %594 = vmatpush1.bf16.msra.mxu0 0
  %595 = vmatprep.subr.bf16.mxu0 0
  %596 = vmatpush1.bf16.msra.mxu0 0
  %597 = vmatprep.subr.bf16.mxu0 0
  %598 = vmatpush1.bf16.msra.mxu0 0
  %599 = vmatprep.subr.bf16.mxu0 0
  %600 = vmatpush1.bf16.msra.mxu0 0
  %601 = vmatprep.subr.bf16.mxu0 0
  %602 = vmatpush1.bf16.msra.mxu0 0
  %603 = vmatprep.mubr.bf16.mxu0 0
  %604 = vmatmul.mubr.bf16.gmra.mrb[0].mxu0 %v337
  %v605 = vpop.f32.mrb[0].mxu0
  %v606 = vadd.f32 0.0, %v605
  %v607 = vpop.f32.mrb[0].mxu0
  %v608 = vadd.f32 0.0, %v607
  %v609 = vpop.f32.mrb[0].mxu0
  %v610 = vpop.f32.mrb[0].mxu0
  %611 = vdwg.mxu0
  %v612 = vadd.f32 %v332, %v565
  %v613 = vadd.f32 %v333, %v567
  %v614 = vadd.f32 %v334, %v606
  %v615 = vadd.f32 %v335, %v608
  %v616 = vxor.u32 %v612, 2147483648
  %v617 = vmul.f32 %v616, 1.442695
  %v618 = vpow.pop %v617
  %v619 = vadd.f32 %v618, 1.0
  %v620 = vrcp.pop %v619
  %v621 = vmul.f32 1.0, %v620
  %v622 = vxor.u32 %v613, 2147483648
  %v623 = vmul.f32 %v622, 1.442695
  %v624 = vpow.pop %v623
  %v625 = vadd.f32 %v624, 1.0
  %v626 = vrcp.pop %v625
  %v627 = vmul.f32 1.0, %v626
  %v628 = vtanh.pop %v614
  %v629 = vxor.u32 %v615, 2147483648
  %v630 = vmul.f32 %v629, 1.442695
  %v631 = vpow.pop %v630
  %v632 = vadd.f32 %v631, 1.0
  %v633 = vrcp.pop %v632
  %v634 = vmul.f32 1.0, %v633
  %v635 = vld [vmem:[#allocation3] sm:$0xff]
  %v636 = vmul.f32 %v627, %v635
  %v637 = vmul.f32 %v621, %v628
  %v638 = vadd.f32 %v636, %v637
  %v639 = vtanh.pop %v638
  %v640 = vmul.f32 %v634, %v639
  %641 = vst [vmem:[#allocation3] sm:$0xff] %v638
  %642 = vst [vmem:[#allocation2] sm:$0xff] %v640
  %v643 = vpack.c.bf16 %v640, %v640
  %s644 = scalar_lea.vmem %s2, 4
  %645 = vst [vmem:[%s644] sm:$0xf] %v643
  %s646 = scalar_lea.vmem %s0, 64
  %v647 = vld [vmem:[%s646] sm:$0xff]
  %v648 = vld [vmem:[%s646 + $0x8] sm:$0xff]
  %v649 = vld [vmem:[%s646 + $0x10] sm:$0xff]
  %v650 = vld [vmem:[%s646 + $0x18] sm:$0xff]
  %v651 = vld [vmem:[#allocation2] sm:$0xff]
  %v652 = vpack.c.bf16 %v651, %v651
  %v653 = vld [vmem:[%s1] sm:$0xff]
  %v654 = vld [vmem:[%s1 + $0x8] sm:$0xff]
  %v655 = vld [vmem:[%s1 + $0x10] sm:$0xff]
  %v656 = vld [vmem:[%s1 + $0x18] sm:$0xff]
  %v657 = vld [vmem:[%s1 + $0x20] sm:$0xff]
  %v658 = vld [vmem:[%s1 + $0x28] sm:$0xff]
  %v659 = vld [vmem:[%s1 + $0x30] sm:$0xff]
  %v660 = vld [vmem:[%s1 + $0x38] sm:$0xff]
  %v661 = vld [vmem:[%s1 + $0x40] sm:$0xff]
  %v662 = vld [vmem:[%s1 + $0x48] sm:$0xff]
  %v663 = vld [vmem:[%s1 + $0x50] sm:$0xff]
  %v664 = vld [vmem:[%s1 + $0x58] sm:$0xff]
  %v665 = vld [vmem:[%s1 + $0x60] sm:$0xff]
  %v666 = vld [vmem:[%s1 + $0x68] sm:$0xff]
  %v667 = vld [vmem:[%s1 + $0x70] sm:$0xff]
  %v668 = vld [vmem:[%s1 + $0x78] sm:$0xff]
  %v669 = vld [vmem:[%s1 + $0x80] sm:$0xff]
  %v670 = vld [vmem:[%s1 + $0x88] sm:$0xff]
  %v671 = vld [vmem:[%s1 + $0x90] sm:$0xff]
  %v672 = vld [vmem:[%s1 + $0x98] sm:$0xff]
  %v673 = vld [vmem:[%s1 + $0xa0] sm:$0xff]
  %v674 = vld [vmem:[%s1 + $0xa8] sm:$0xff]
  %v675 = vld [vmem:[%s1 + $0xb0] sm:$0xff]
  %v676 = vld [vmem:[%s1 + $0xb8] sm:$0xff]
  %v677 = vld [vmem:[%s1 + $0xc0] sm:$0xff]
  %v678 = vld [vmem:[%s1 + $0xc8] sm:$0xff]
  %v679 = vld [vmem:[%s1 + $0xd0] sm:$0xff]
  %v680 = vld [vmem:[%s1 + $0xd8] sm:$0xff]
  %v681 = vld [vmem:[%s1 + $0xe0] sm:$0xff]
  %v682 = vld [vmem:[%s1 + $0xe8] sm:$0xff]
  %v683 = vld [vmem:[%s1 + $0xf0] sm:$0xff]
  %v684 = vld [vmem:[%s1 + $0xf8] sm:$0xff]
  %v717 = vunpack.c.l.b16 %v653
  %v718 = vunpack.c.h.b16 %v653
  %v719 = vunpack.c.l.b16 %v654
  %v720 = vunpack.c.h.b16 %v654
  %v721 = vunpack.c.l.b16 %v655
  %v722 = vunpack.c.h.b16 %v655
  %v723 = vunpack.c.l.b16 %v656
  %v724 = vunpack.c.h.b16 %v656
  %v725 = vunpack.c.l.b16 %v657
  %v726 = vunpack.c.h.b16 %v657
  %v727 = vunpack.c.l.b16 %v658
  %v728 = vunpack.c.h.b16 %v658
  %v729 = vunpack.c.l.b16 %v659
  %v730 = vunpack.c.h.b16 %v659
  %v731 = vunpack.c.l.b16 %v660
  %v732 = vunpack.c.h.b16 %v660
  %v733 = vunpack.c.l.b16 %v661
  %v734 = vunpack.c.h.b16 %v661
  %v735 = vunpack.c.l.b16 %v662
  %v736 = vunpack.c.h.b16 %v662
  %v737 = vunpack.c.l.b16 %v663
  %v738 = vunpack.c.h.b16 %v663
  %v739 = vunpack.c.l.b16 %v664
  %v740 = vunpack.c.h.b16 %v664
  %v741 = vunpack.c.l.b16 %v665
  %v742 = vunpack.c.h.b16 %v665
  %v743 = vunpack.c.l.b16 %v666
  %v744 = vunpack.c.h.b16 %v666
  %v745 = vunpack.c.l.b16 %v667
  %v746 = vunpack.c.h.b16 %v667
  %v747 = vunpack.c.l.b16 %v668
  %v748 = vunpack.c.h.b16 %v668
  %v749 = vunpack.c.l.b16 %v669
  %v750 = vunpack.c.h.b16 %v669
  %v751 = vunpack.c.l.b16 %v670
  %v752 = vunpack.c.h.b16 %v670
  %v753 = vunpack.c.l.b16 %v671
  %v754 = vunpack.c.h.b16 %v671
  %v755 = vunpack.c.l.b16 %v672
  %v756 = vunpack.c.h.b16 %v672
  %v757 = vunpack.c.l.b16 %v673
  %v758 = vunpack.c.h.b16 %v673
  %v759 = vunpack.c.l.b16 %v674
  %v760 = vunpack.c.h.b16 %v674
  %v761 = vunpack.c.l.b16 %v675
  %v762 = vunpack.c.h.b16 %v675
  %v763 = vunpack.c.l.b16 %v676
  %v764 = vunpack.c.h.b16 %v676
  %v765 = vunpack.c.l.b16 %v677
  %v766 = vunpack.c.h.b16 %v677
  %v767 = vunpack.c.l.b16 %v678
  %v768 = vunpack.c.h.b16 %v678
  %v769 = vunpack.c.l.b16 %v679
  %v770 = vunpack.c.h.b16 %v679
  %v771 = vunpack.c.l.b16 %v680
  %v772 = vunpack.c.h.b16 %v680
  %v773 = vunpack.c.l.b16 %v681
  %v774 = vunpack.c.h.b16 %v681
  %v775 = vunpack.c.l.b16 %v682
  %v776 = vunpack.c.h.b16 %v682
  %v777 = vunpack.c.l.b16 %v683
  %v778 = vunpack.c.h.b16 %v683
  %v779 = vunpack.c.l.b16 %v684
  %v780 = vunpack.c.h.b16 %v684
  %v781 = vpack.c.b16 %v721, %v717
  %v782 = vpack.c.b16 %v722, %v718
  %v783 = vpack.c.b16 %v723, %v719
  %v784 = vpack.c.b16 %v724, %v720
  %v785 = vpack.c.b16 %v729, %v725
  %v786 = vpack.c.b16 %v730, %v726
  %v787 = vpack.c.b16 %v731, %v727
  %v788 = vpack.c.b16 %v732, %v728
  %v789 = vpack.c.b16 %v737, %v733
  %v790 = vpack.c.b16 %v738, %v734
  %v791 = vpack.c.b16 %v739, %v735
  %v792 = vpack.c.b16 %v740, %v736
  %v793 = vpack.c.b16 %v745, %v741
  %v794 = vpack.c.b16 %v746, %v742
  %v795 = vpack.c.b16 %v747, %v743
  %v796 = vpack.c.b16 %v748, %v744
  %v797 = vpack.c.b16 %v753, %v749
  %v798 = vpack.c.b16 %v754, %v750
  %v799 = vpack.c.b16 %v755, %v751
  %v800 = vpack.c.b16 %v756, %v752
  %v801 = vpack.c.b16 %v761, %v757
  %v802 = vpack.c.b16 %v762, %v758
  %v803 = vpack.c.b16 %v763, %v759
  %v804 = vpack.c.b16 %v764, %v760
  %v805 = vpack.c.b16 %v769, %v765
  %v806 = vpack.c.b16 %v770, %v766
  %v807 = vpack.c.b16 %v771, %v767
  %v808 = vpack.c.b16 %v772, %v768
  %v809 = vpack.c.b16 %v777, %v773
  %v810 = vpack.c.b16 %v778, %v774
  %v811 = vpack.c.b16 %v779, %v775
  %v812 = vpack.c.b16 %v780, %v776
  %845 = vmatprep.subr.bf16.mxu0 %v782
  %846 = vmatpush1.bf16.msra.mxu0 %v781
  %847 = vmatprep.subr.bf16.mxu0 %v786
  %848 = vmatpush1.bf16.msra.mxu0 %v785
  %849 = vmatprep.subr.bf16.mxu0 %v790
  %850 = vmatpush1.bf16.msra.mxu0 %v789
  %851 = vmatprep.subr.bf16.mxu0 %v794
  %852 = vmatpush1.bf16.msra.mxu0 %v793
  %853 = vmatprep.subr.bf16.mxu0 %v798
  %854 = vmatpush1.bf16.msra.mxu0 %v797
  %855 = vmatprep.subr.bf16.mxu0 %v802
  %856 = vmatpush1.bf16.msra.mxu0 %v801
  %857 = vmatprep.subr.bf16.mxu0 %v806
  %858 = vmatpush1.bf16.msra.mxu0 %v805
  %859 = vmatprep.subr.bf16.mxu0 %v810
  %860 = vmatpush1.bf16.msra.mxu0 %v809
  %861 = vmatprep.subr.bf16.mxu0 0
  %862 = vmatpush1.bf16.msra.mxu0 0
  %863 = vmatprep.subr.bf16.mxu0 0
  %864 = vmatpush1.bf16.msra.mxu0 0
  %865 = vmatprep.subr.bf16.mxu0 0
  %866 = vmatpush1.bf16.msra.mxu0 0
  %867 = vmatprep.subr.bf16.mxu0 0
  %868 = vmatpush1.bf16.msra.mxu0 0
  %869 = vmatprep.subr.bf16.mxu0 0
  %870 = vmatpush1.bf16.msra.mxu0 0
  %871 = vmatprep.subr.bf16.mxu0 0
  %872 = vmatpush1.bf16.msra.mxu0 0
  %873 = vmatprep.subr.bf16.mxu0 0
  %874 = vmatpush1.bf16.msra.mxu0 0
  %875 = vmatprep.subr.bf16.mxu0 0
  %876 = vmatpush1.bf16.msra.mxu0 0
  %877 = vmatprep.mubr.bf16.mxu0 0
  %878 = vmatmul.mubr.bf16.gmra.mrb[0].mxu0 %v652
  %v879 = vpop.f32.mrb[0].mxu0
  %v880 = vadd.f32 0.0, %v879
  %v881 = vpop.f32.mrb[0].mxu0
  %v882 = vadd.f32 0.0, %v881
  %v883 = vpop.f32.mrb[0].mxu0
  %v884 = vpop.f32.mrb[0].mxu0
  %885 = vdwg.mxu0
  %886 = vmatprep.subr.bf16.mxu0 %v784
  %887 = vmatpush1.bf16.msra.mxu0 %v783
  %888 = vmatprep.subr.bf16.mxu0 %v788
  %889 = vmatpush1.bf16.msra.mxu0 %v787
  %890 = vmatprep.subr.bf16.mxu0 %v792
  %891 = vmatpush1.bf16.msra.mxu0 %v791
  %892 = vmatprep.subr.bf16.mxu0 %v796
  %893 = vmatpush1.bf16.msra.mxu0 %v795
  %894 = vmatprep.subr.bf16.mxu0 %v800
  %895 = vmatpush1.bf16.msra.mxu0 %v799
  %896 = vmatprep.subr.bf16.mxu0 %v804
  %897 = vmatpush1.bf16.msra.mxu0 %v803
  %898 = vmatprep.subr.bf16.mxu0 %v808
  %899 = vmatpush1.bf16.msra.mxu0 %v807
  %900 = vmatprep.subr.bf16.mxu0 %v812
  %901 = vmatpush1.bf16.msra.mxu0 %v811
  %902 = vmatprep.subr.bf16.mxu0 0
  %903 = vmatpush1.bf16.msra.mxu0 0
  %904 = vmatprep.subr.bf16.mxu0 0
  %905 = vmatpush1.bf16.msra.mxu0 0
  %906 = vmatprep.subr.bf16.mxu0 0
  %907 = vmatpush1.bf16.msra.mxu0 0
  %908 = vmatprep.subr.bf16.mxu0 0
  %909 = vmatpush1.bf16.msra.mxu0 0
  %910 = vmatprep.subr.bf16.mxu0 0
  %911 = vmatpush1.bf16.msra.mxu0 0
  %912 = vmatprep.subr.bf16.mxu0 0
  %913 = vmatpush1.bf16.msra.mxu0 0
  %914 = vmatprep.subr.bf16.mxu0 0
  %915 = vmatpush1.bf16.msra.mxu0 0
  %916 = vmatprep.subr.bf16.mxu0 0
  %917 = vmatpush1.bf16.msra.mxu0 0
  %918 = vmatprep.mubr.bf16.mxu0 0
  %919 = vmatmul.mubr.bf16.gmra.mrb[0].mxu0 %v652
  %v920 = vpop.f32.mrb[0].mxu0
  %v921 = vadd.f32 0.0, %v920
  %v922 = vpop.f32.mrb[0].mxu0
  %v923 = vadd.f32 0.0, %v922
  %v924 = vpop.f32.mrb[0].mxu0
  %v925 = vpop.f32.mrb[0].mxu0
  %926 = vdwg.mxu0
  %v927 = vadd.f32 %v647, %v880
  %v928 = vadd.f32 %v648, %v882
  %v929 = vadd.f32 %v649, %v921
  %v930 = vadd.f32 %v650, %v923
  %v931 = vxor.u32 %v927, 2147483648
  %v932 = vmul.f32 %v931, 1.442695
  %v933 = vpow.pop %v932
  %v934 = vadd.f32 %v933, 1.0
  %v935 = vrcp.pop %v934
  %v936 = vmul.f32 1.0, %v935
  %v937 = vxor.u32 %v928, 2147483648
  %v938 = vmul.f32 %v937, 1.442695
  %v939 = vpow.pop %v938
  %v940 = vadd.f32 %v939, 1.0
  %v941 = vrcp.pop %v940
  %v942 = vmul.f32 1.0, %v941
  %v943 = vtanh.pop %v929
  %v944 = vxor.u32 %v930, 2147483648
  %v945 = vmul.f32 %v944, 1.442695
  %v946 = vpow.pop %v945
  %v947 = vadd.f32 %v946, 1.0
  %v948 = vrcp.pop %v947
  %v949 = vmul.f32 1.0, %v948
  %v950 = vld [vmem:[#allocation3] sm:$0xff]
  %v951 = vmul.f32 %v942, %v950
  %v952 = vmul.f32 %v936, %v943
  %v953 = vadd.f32 %v951, %v952
  %v954 = vtanh.pop %v953
  %v955 = vmul.f32 %v949, %v954
  %956 = vst [vmem:[#allocation3] sm:$0xff] %v953
  %957 = vst [vmem:[#allocation2] sm:$0xff] %v955
  %v958 = vpack.c.bf16 %v955, %v955
  %s959 = scalar_lea.vmem %s2, 8
  %960 = vst [vmem:[%s959] sm:$0xf] %v958
  %s961 = scalar_lea.vmem %s0, 96
  %v962 = vld [vmem:[%s961] sm:$0xff]
  %v963 = vld [vmem:[%s961 + $0x8] sm:$0xff]
  %v964 = vld [vmem:[%s961 + $0x10] sm:$0xff]
  %v965 = vld [vmem:[%s961 + $0x18] sm:$0xff]
  %v966 = vld [vmem:[#allocation2] sm:$0xff]
  %v967 = vpack.c.bf16 %v966, %v966
  %v968 = vld [vmem:[%s1] sm:$0xff]
  %v969 = vld [vmem:[%s1 + $0x8] sm:$0xff]
  %v970 = vld [vmem:[%s1 + $0x10] sm:$0xff]
  %v971 = vld [vmem:[%s1 + $0x18] sm:$0xff]
  %v972 = vld [vmem:[%s1 + $0x20] sm:$0xff]
  %v973 = vld [vmem:[%s1 + $0x28] sm:$0xff]
  %v974 = vld [vmem:[%s1 + $0x30] sm:$0xff]
  %v975 = vld [vmem:[%s1 + $0x38] sm:$0xff]
  %v976 = vld [vmem:[%s1 + $0x40] sm:$0xff]
  %v977 = vld [vmem:[%s1 + $0x48] sm:$0xff]
  %v978 = vld [vmem:[%s1 + $0x50] sm:$0xff]
  %v979 = vld [vmem:[%s1 + $0x58] sm:$0xff]
  %v980 = vld [vmem:[%s1 + $0x60] sm:$0xff]
  %v981 = vld [vmem:[%s1 + $0x68] sm:$0xff]
  %v982 = vld [vmem:[%s1 + $0x70] sm:$0xff]
  %v983 = vld [vmem:[%s1 + $0x78] sm:$0xff]
  %v984 = vld [vmem:[%s1 + $0x80] sm:$0xff]
  %v985 = vld [vmem:[%s1 + $0x88] sm:$0xff]
  %v986 = vld [vmem:[%s1 + $0x90] sm:$0xff]
  %v987 = vld [vmem:[%s1 + $0x98] sm:$0xff]
  %v988 = vld [vmem:[%s1 + $0xa0] sm:$0xff]
  %v989 = vld [vmem:[%s1 + $0xa8] sm:$0xff]
  %v990 = vld [vmem:[%s1 + $0xb0] sm:$0xff]
  %v991 = vld [vmem:[%s1 + $0xb8] sm:$0xff]
  %v992 = vld [vmem:[%s1 + $0xc0] sm:$0xff]
  %v993 = vld [vmem:[%s1 + $0xc8] sm:$0xff]
  %v994 = vld [vmem:[%s1 + $0xd0] sm:$0xff]
  %v995 = vld [vmem:[%s1 + $0xd8] sm:$0xff]
  %v996 = vld [vmem:[%s1 + $0xe0] sm:$0xff]
  %v997 = vld [vmem:[%s1 + $0xe8] sm:$0xff]
  %v998 = vld [vmem:[%s1 + $0xf0] sm:$0xff]
  %v999 = vld [vmem:[%s1 + $0xf8] sm:$0xff]
  %v1032 = vunpack.c.l.b16 %v968
  %v1033 = vunpack.c.h.b16 %v968
  %v1034 = vunpack.c.l.b16 %v969
  %v1035 = vunpack.c.h.b16 %v969
  %v1036 = vunpack.c.l.b16 %v970
  %v1037 = vunpack.c.h.b16 %v970
  %v1038 = vunpack.c.l.b16 %v971
  %v1039 = vunpack.c.h.b16 %v971
  %v1040 = vunpack.c.l.b16 %v972
  %v1041 = vunpack.c.h.b16 %v972
  %v1042 = vunpack.c.l.b16 %v973
  %v1043 = vunpack.c.h.b16 %v973
  %v1044 = vunpack.c.l.b16 %v974
  %v1045 = vunpack.c.h.b16 %v974
  %v1046 = vunpack.c.l.b16 %v975
  %v1047 = vunpack.c.h.b16 %v975
  %v1048 = vunpack.c.l.b16 %v976
  %v1049 = vunpack.c.h.b16 %v976
  %v1050 = vunpack.c.l.b16 %v977
  %v1051 = vunpack.c.h.b16 %v977
  %v1052 = vunpack.c.l.b16 %v978
  %v1053 = vunpack.c.h.b16 %v978
  %v1054 = vunpack.c.l.b16 %v979
  %v1055 = vunpack.c.h.b16 %v979
  %v1056 = vunpack.c.l.b16 %v980
  %v1057 = vunpack.c.h.b16 %v980
  %v1058 = vunpack.c.l.b16 %v981
  %v1059 = vunpack.c.h.b16 %v981
  %v1060 = vunpack.c.l.b16 %v982
  %v1061 = vunpack.c.h.b16 %v982
  %v1062 = vunpack.c.l.b16 %v983
  %v1063 = vunpack.c.h.b16 %v983
  %v1064 = vunpack.c.l.b16 %v984
  %v1065 = vunpack.c.h.b16 %v984
  %v1066 = vunpack.c.l.b16 %v985
  %v1067 = vunpack.c.h.b16 %v985
  %v1068 = vunpack.c.l.b16 %v986
  %v1069 = vunpack.c.h.b16 %v986
  %v1070 = vunpack.c.l.b16 %v987
  %v1071 = vunpack.c.h.b16 %v987
  %v1072 = vunpack.c.l.b16 %v988
  %v1073 = vunpack.c.h.b16 %v988
  %v1074 = vunpack.c.l.b16 %v989
  %v1075 = vunpack.c.h.b16 %v989
  %v1076 = vunpack.c.l.b16 %v990
  %v1077 = vunpack.c.h.b16 %v990
  %v1078 = vunpack.c.l.b16 %v991
  %v1079 = vunpack.c.h.b16 %v991
  %v1080 = vunpack.c.l.b16 %v992
  %v1081 = vunpack.c.h.b16 %v992
  %v1082 = vunpack.c.l.b16 %v993
  %v1083 = vunpack.c.h.b16 %v993
  %v1084 = vunpack.c.l.b16 %v994
  %v1085 = vunpack.c.h.b16 %v994
  %v1086 = vunpack.c.l.b16 %v995
  %v1087 = vunpack.c.h.b16 %v995
  %v1088 = vunpack.c.l.b16 %v996
  %v1089 = vunpack.c.h.b16 %v996
  %v1090 = vunpack.c.l.b16 %v997
  %v1091 = vunpack.c.h.b16 %v997
  %v1092 = vunpack.c.l.b16 %v998
  %v1093 = vunpack.c.h.b16 %v998
  %v1094 = vunpack.c.l.b16 %v999
  %v1095 = vunpack.c.h.b16 %v999
  %v1096 = vpack.c.b16 %v1036, %v1032
  %v1097 = vpack.c.b16 %v1037, %v1033
  %v1098 = vpack.c.b16 %v1038, %v1034
  %v1099 = vpack.c.b16 %v1039, %v1035
  %v1100 = vpack.c.b16 %v1044, %v1040
  %v1101 = vpack.c.b16 %v1045, %v1041
  %v1102 = vpack.c.b16 %v1046, %v1042
  %v1103 = vpack.c.b16 %v1047, %v1043
  %v1104 = vpack.c.b16 %v1052, %v1048
  %v1105 = vpack.c.b16 %v1053, %v1049
  %v1106 = vpack.c.b16 %v1054, %v1050
  %v1107 = vpack.c.b16 %v1055, %v1051
  %v1108 = vpack.c.b16 %v1060, %v1056
  %v1109 = vpack.c.b16 %v1061, %v1057
  %v1110 = vpack.c.b16 %v1062, %v1058
  %v1111 = vpack.c.b16 %v1063, %v1059
  %v1112 = vpack.c.b16 %v1068, %v1064
  %v1113 = vpack.c.b16 %v1069, %v1065
  %v1114 = vpack.c.b16 %v1070, %v1066
  %v1115 = vpack.c.b16 %v1071, %v1067
  %v1116 = vpack.c.b16 %v1076, %v1072
  %v1117 = vpack.c.b16 %v1077, %v1073
  %v1118 = vpack.c.b16 %v1078, %v1074
  %v1119 = vpack.c.b16 %v1079, %v1075
  %v1120 = vpack.c.b16 %v1084, %v1080
  %v1121 = vpack.c.b16 %v1085, %v1081
  %v1122 = vpack.c.b16 %v1086, %v1082
  %v1123 = vpack.c.b16 %v1087, %v1083
  %v1124 = vpack.c.b16 %v1092, %v1088
  %v1125 = vpack.c.b16 %v1093, %v1089
  %v1126 = vpack.c.b16 %v1094, %v1090
  %v1127 = vpack.c.b16 %v1095, %v1091
  %1160 = vmatprep.subr.bf16.mxu0 %v1097
  %1161 = vmatpush1.bf16.msra.mxu0 %v1096
  %1162 = vmatprep.subr.bf16.mxu0 %v1101
  %1163 = vmatpush1.bf16.msra.mxu0 %v1100
  %1164 = vmatprep.subr.bf16.mxu0 %v1105
  %1165 = vmatpush1.bf16.msra.mxu0 %v1104
  %1166 = vmatprep.subr.bf16.mxu0 %v1109
  %1167 = vmatpush1.bf16.msra.mxu0 %v1108
  %1168 = vmatprep.subr.bf16.mxu0 %v1113
  %1169 = vmatpush1.bf16.msra.mxu0 %v1112
  %1170 = vmatprep.subr.bf16.mxu0 %v1117
  %1171 = vmatpush1.bf16.msra.mxu0 %v1116
  %1172 = vmatprep.subr.bf16.mxu0 %v1121
  %1173 = vmatpush1.bf16.msra.mxu0 %v1120
  %1174 = vmatprep.subr.bf16.mxu0 %v1125
  %1175 = vmatpush1.bf16.msra.mxu0 %v1124
  %1176 = vmatprep.subr.bf16.mxu0 0
  %1177 = vmatpush1.bf16.msra.mxu0 0
  %1178 = vmatprep.subr.bf16.mxu0 0
  %1179 = vmatpush1.bf16.msra.mxu0 0
  %1180 = vmatprep.subr.bf16.mxu0 0
  %1181 = vmatpush1.bf16.msra.mxu0 0
  %1182 = vmatprep.subr.bf16.mxu0 0
  %1183 = vmatpush1.bf16.msra.mxu0 0
  %1184 = vmatprep.subr.bf16.mxu0 0
  %1185 = vmatpush1.bf16.msra.mxu0 0
  %1186 = vmatprep.subr.bf16.mxu0 0
  %1187 = vmatpush1.bf16.msra.mxu0 0
  %1188 = vmatprep.subr.bf16.mxu0 0
  %1189 = vmatpush1.bf16.msra.mxu0 0
  %1190 = vmatprep.subr.bf16.mxu0 0
  %1191 = vmatpush1.bf16.msra.mxu0 0
  %1192 = vmatprep.mubr.bf16.mxu0 0
  %1193 = vmatmul.mubr.bf16.gmra.mrb[0].mxu0 %v967
  %v1194 = vpop.f32.mrb[0].mxu0
  %v1195 = vadd.f32 0.0, %v1194
  %v1196 = vpop.f32.mrb[0].mxu0
  %v1197 = vadd.f32 0.0, %v1196
  %v1198 = vpop.f32.mrb[0].mxu0
  %v1199 = vpop.f32.mrb[0].mxu0
  %1200 = vdwg.mxu0
  %1201 = vmatprep.subr.bf16.mxu0 %v1099
  %1202 = vmatpush1.bf16.msra.mxu0 %v1098
  %1203 = vmatprep.subr.bf16.mxu0 %v1103
  %1204 = vmatpush1.bf16.msra.mxu0 %v1102
  %1205 = vmatprep.subr.bf16.mxu0 %v1107
  %1206 = vmatpush1.bf16.msra.mxu0 %v1106
  %1207 = vmatprep.subr.bf16.mxu0 %v1111
  %1208 = vmatpush1.bf16.msra.mxu0 %v1110
  %1209 = vmatprep.subr.bf16.mxu0 %v1115
  %1210 = vmatpush1.bf16.msra.mxu0 %v1114
  %1211 = vmatprep.subr.bf16.mxu0 %v1119
  %1212 = vmatpush1.bf16.msra.mxu0 %v1118
  %1213 = vmatprep.subr.bf16.mxu0 %v1123
  %1214 = vmatpush1.bf16.msra.mxu0 %v1122
  %1215 = vmatprep.subr.bf16.mxu0 %v1127
  %1216 = vmatpush1.bf16.msra.mxu0 %v1126
  %1217 = vmatprep.subr.bf16.mxu0 0
  %1218 = vmatpush1.bf16.msra.mxu0 0
  %1219 = vmatprep.subr.bf16.mxu0 0
  %1220 = vmatpush1.bf16.msra.mxu0 0
  %1221 = vmatprep.subr.bf16.mxu0 0
  %1222 = vmatpush1.bf16.msra.mxu0 0
  %1223 = vmatprep.subr.bf16.mxu0 0
  %1224 = vmatpush1.bf16.msra.mxu0 0
  %1225 = vmatprep.subr.bf16.mxu0 0
  %1226 = vmatpush1.bf16.msra.mxu0 0
  %1227 = vmatprep.subr.bf16.mxu0 0
  %1228 = vmatpush1.bf16.msra.mxu0 0
  %1229 = vmatprep.subr.bf16.mxu0 0
  %1230 = vmatpush1.bf16.msra.mxu0 0
  %1231 = vmatprep.subr.bf16.mxu0 0
  %1232 = vmatpush1.bf16.msra.mxu0 0
  %1233 = vmatprep.mubr.bf16.mxu0 0
  %1234 = vmatmul.mubr.bf16.gmra.mrb[0].mxu0 %v967
  %v1235 = vpop.f32.mrb[0].mxu0
  %v1236 = vadd.f32 0.0, %v1235
  %v1237 = vpop.f32.mrb[0].mxu0
  %v1238 = vadd.f32 0.0, %v1237
  %v1239 = vpop.f32.mrb[0].mxu0
  %v1240 = vpop.f32.mrb[0].mxu0
  %1241 = vdwg.mxu0
  %v1242 = vadd.f32 %v962, %v1195
  %v1243 = vadd.f32 %v963, %v1197
  %v1244 = vadd.f32 %v964, %v1236
  %v1245 = vadd.f32 %v965, %v1238
  %v1246 = vxor.u32 %v1242, 2147483648
  %v1247 = vmul.f32 %v1246, 1.442695
  %v1248 = vpow.pop %v1247
  %v1249 = vadd.f32 %v1248, 1.0
  %v1250 = vrcp.pop %v1249
  %v1251 = vmul.f32 1.0, %v1250
  %v1252 = vxor.u32 %v1243, 2147483648
  %v1253 = vmul.f32 %v1252, 1.442695
  %v1254 = vpow.pop %v1253
  %v1255 = vadd.f32 %v1254, 1.0
  %v1256 = vrcp.pop %v1255
  %v1257 = vmul.f32 1.0, %v1256
  %v1258 = vtanh.pop %v1244
  %v1259 = vxor.u32 %v1245, 2147483648
  %v1260 = vmul.f32 %v1259, 1.442695
  %v1261 = vpow.pop %v1260
  %v1262 = vadd.f32 %v1261, 1.0
  %v1263 = vrcp.pop %v1262
  %v1264 = vmul.f32 1.0, %v1263
  %v1265 = vld [vmem:[#allocation3] sm:$0xff]
  %v1266 = vmul.f32 %v1257, %v1265
  %v1267 = vmul.f32 %v1251, %v1258
  %v1268 = vadd.f32 %v1266, %v1267
  %v1269 = vtanh.pop %v1268
  %v1270 = vmul.f32 %v1264, %v1269
  %1271 = vst [vmem:[#allocation3] sm:$0xff] %v1268
  %1272 = vst [vmem:[#allocation2] sm:$0xff] %v1270
  %v1273 = vpack.c.bf16 %v1270, %v1270
  %s1274 = scalar_lea.vmem %s2, 12
  %1275 = vst [vmem:[%s1274] sm:$0xf] %v1273
  %s1276 = scalar_lea.vmem %s0, 128
  %v1277 = vld [vmem:[%s1276] sm:$0xff]
  %v1278 = vld [vmem:[%s1276 + $0x8] sm:$0xff]
  %v1279 = vld [vmem:[%s1276 + $0x10] sm:$0xff]
  %v1280 = vld [vmem:[%s1276 + $0x18] sm:$0xff]
  %v1281 = vld [vmem:[#allocation2] sm:$0xff]
  %v1282 = vpack.c.bf16 %v1281, %v1281
  %v1283 = vld [vmem:[%s1] sm:$0xff]
  %v1284 = vld [vmem:[%s1 + $0x8] sm:$0xff]
  %v1285 = vld [vmem:[%s1 + $0x10] sm:$0xff]
  %v1286 = vld [vmem:[%s1 + $0x18] sm:$0xff]
  %v1287 = vld [vmem:[%s1 + $0x20] sm:$0xff]
  %v1288 = vld [vmem:[%s1 + $0x28] sm:$0xff]
  %v1289 = vld [vmem:[%s1 + $0x30] sm:$0xff]
  %v1290 = vld [vmem:[%s1 + $0x38] sm:$0xff]
  %v1291 = vld [vmem:[%s1 + $0x40] sm:$0xff]
  %v1292 = vld [vmem:[%s1 + $0x48] sm:$0xff]
  %v1293 = vld [vmem:[%s1 + $0x50] sm:$0xff]
  %v1294 = vld [vmem:[%s1 + $0x58] sm:$0xff]
  %v1295 = vld [vmem:[%s1 + $0x60] sm:$0xff]
  %v1296 = vld [vmem:[%s1 + $0x68] sm:$0xff]
  %v1297 = vld [vmem:[%s1 + $0x70] sm:$0xff]
  %v1298 = vld [vmem:[%s1 + $0x78] sm:$0xff]
  %v1299 = vld [vmem:[%s1 + $0x80] sm:$0xff]
  %v1300 = vld [vmem:[%s1 + $0x88] sm:$0xff]
  %v1301 = vld [vmem:[%s1 + $0x90] sm:$0xff]
  %v1302 = vld [vmem:[%s1 + $0x98] sm:$0xff]
  %v1303 = vld [vmem:[%s1 + $0xa0] sm:$0xff]
  %v1304 = vld [vmem:[%s1 + $0xa8] sm:$0xff]
  %v1305 = vld [vmem:[%s1 + $0xb0] sm:$0xff]
  %v1306 = vld [vmem:[%s1 + $0xb8] sm:$0xff]
  %v1307 = vld [vmem:[%s1 + $0xc0] sm:$0xff]
  %v1308 = vld [vmem:[%s1 + $0xc8] sm:$0xff]
  %v1309 = vld [vmem:[%s1 + $0xd0] sm:$0xff]
  %v1310 = vld [vmem:[%s1 + $0xd8] sm:$0xff]
  %v1311 = vld [vmem:[%s1 + $0xe0] sm:$0xff]
  %v1312 = vld [vmem:[%s1 + $0xe8] sm:$0xff]
  %v1313 = vld [vmem:[%s1 + $0xf0] sm:$0xff]
  %v1314 = vld [vmem:[%s1 + $0xf8] sm:$0xff]
  %v1347 = vunpack.c.l.b16 %v1283
  %v1348 = vunpack.c.h.b16 %v1283
  %v1349 = vunpack.c.l.b16 %v1284
  %v1350 = vunpack.c.h.b16 %v1284
  %v1351 = vunpack.c.l.b16 %v1285
  %v1352 = vunpack.c.h.b16 %v1285
  %v1353 = vunpack.c.l.b16 %v1286
  %v1354 = vunpack.c.h.b16 %v1286
  %v1355 = vunpack.c.l.b16 %v1287
  %v1356 = vunpack.c.h.b16 %v1287
  %v1357 = vunpack.c.l.b16 %v1288
  %v1358 = vunpack.c.h.b16 %v1288
  %v1359 = vunpack.c.l.b16 %v1289
  %v1360 = vunpack.c.h.b16 %v1289
  %v1361 = vunpack.c.l.b16 %v1290
  %v1362 = vunpack.c.h.b16 %v1290
  %v1363 = vunpack.c.l.b16 %v1291
  %v1364 = vunpack.c.h.b16 %v1291
  %v1365 = vunpack.c.l.b16 %v1292
  %v1366 = vunpack.c.h.b16 %v1292
  %v1367 = vunpack.c.l.b16 %v1293
  %v1368 = vunpack.c.h.b16 %v1293
  %v1369 = vunpack.c.l.b16 %v1294
  %v1370 = vunpack.c.h.b16 %v1294
  %v1371 = vunpack.c.l.b16 %v1295
  %v1372 = vunpack.c.h.b16 %v1295
  %v1373 = vunpack.c.l.b16 %v1296
  %v1374 = vunpack.c.h.b16 %v1296
  %v1375 = vunpack.c.l.b16 %v1297
  %v1376 = vunpack.c.h.b16 %v1297
  %v1377 = vunpack.c.l.b16 %v1298
  %v1378 = vunpack.c.h.b16 %v1298
  %v1379 = vunpack.c.l.b16 %v1299
  %v1380 = vunpack.c.h.b16 %v1299
  %v1381 = vunpack.c.l.b16 %v1300
  %v1382 = vunpack.c.h.b16 %v1300
  %v1383 = vunpack.c.l.b16 %v1301
  %v1384 = vunpack.c.h.b16 %v1301
  %v1385 = vunpack.c.l.b16 %v1302
  %v1386 = vunpack.c.h.b16 %v1302
  %v1387 = vunpack.c.l.b16 %v1303
  %v1388 = vunpack.c.h.b16 %v1303
  %v1389 = vunpack.c.l.b16 %v1304
  %v1390 = vunpack.c.h.b16 %v1304
  %v1391 = vunpack.c.l.b16 %v1305
  %v1392 = vunpack.c.h.b16 %v1305
  %v1393 = vunpack.c.l.b16 %v1306
  %v1394 = vunpack.c.h.b16 %v1306
  %v1395 = vunpack.c.l.b16 %v1307
  %v1396 = vunpack.c.h.b16 %v1307
  %v1397 = vunpack.c.l.b16 %v1308
  %v1398 = vunpack.c.h.b16 %v1308
  %v1399 = vunpack.c.l.b16 %v1309
  %v1400 = vunpack.c.h.b16 %v1309
  %v1401 = vunpack.c.l.b16 %v1310
  %v1402 = vunpack.c.h.b16 %v1310
  %v1403 = vunpack.c.l.b16 %v1311
  %v1404 = vunpack.c.h.b16 %v1311
  %v1405 = vunpack.c.l.b16 %v1312
  %v1406 = vunpack.c.h.b16 %v1312
  %v1407 = vunpack.c.l.b16 %v1313
  %v1408 = vunpack.c.h.b16 %v1313
  %v1409 = vunpack.c.l.b16 %v1314
  %v1410 = vunpack.c.h.b16 %v1314
  %v1411 = vpack.c.b16 %v1351, %v1347
  %v1412 = vpack.c.b16 %v1352, %v1348
  %v1413 = vpack.c.b16 %v1353, %v1349
  %v1414 = vpack.c.b16 %v1354, %v1350
  %v1415 = vpack.c.b16 %v1359, %v1355
  %v1416 = vpack.c.b16 %v1360, %v1356
  %v1417 = vpack.c.b16 %v1361, %v1357
  %v1418 = vpack.c.b16 %v1362, %v1358
  %v1419 = vpack.c.b16 %v1367, %v1363
  %v1420 = vpack.c.b16 %v1368, %v1364
  %v1421 = vpack.c.b16 %v1369, %v1365
  %v1422 = vpack.c.b16 %v1370, %v1366
  %v1423 = vpack.c.b16 %v1375, %v1371
  %v1424 = vpack.c.b16 %v1376, %v1372
  %v1425 = vpack.c.b16 %v1377, %v1373
  %v1426 = vpack.c.b16 %v1378, %v1374
  %v1427 = vpack.c.b16 %v1383, %v1379
  %v1428 = vpack.c.b16 %v1384, %v1380
  %v1429 = vpack.c.b16 %v1385, %v1381
  %v1430 = vpack.c.b16 %v1386, %v1382
  %v1431 = vpack.c.b16 %v1391, %v1387
  %v1432 = vpack.c.b16 %v1392, %v1388
  %v1433 = vpack.c.b16 %v1393, %v1389
  %v1434 = vpack.c.b16 %v1394, %v1390
  %v1435 = vpack.c.b16 %v1399, %v1395
  %v1436 = vpack.c.b16 %v1400, %v1396
  %v1437 = vpack.c.b16 %v1401, %v1397
  %v1438 = vpack.c.b16 %v1402, %v1398
  %v1439 = vpack.c.b16 %v1407, %v1403
  %v1440 = vpack.c.b16 %v1408, %v1404
  %v1441 = vpack.c.b16 %v1409, %v1405
  %v1442 = vpack.c.b16 %v1410, %v1406
  %1475 = vmatprep.subr.bf16.mxu0 %v1412
  %1476 = vmatpush1.bf16.msra.mxu0 %v1411
  %1477 = vmatprep.subr.bf16.mxu0 %v1416
  %1478 = vmatpush1.bf16.msra.mxu0 %v1415
  %1479 = vmatprep.subr.bf16.mxu0 %v1420
  %1480 = vmatpush1.bf16.msra.mxu0 %v1419
  %1481 = vmatprep.subr.bf16.mxu0 %v1424
  %1482 = vmatpush1.bf16.msra.mxu0 %v1423
  %1483 = vmatprep.subr.bf16.mxu0 %v1428
  %1484 = vmatpush1.bf16.msra.mxu0 %v1427
  %1485 = vmatprep.subr.bf16.mxu0 %v1432
  %1486 = vmatpush1.bf16.msra.mxu0 %v1431
  %1487 = vmatprep.subr.bf16.mxu0 %v1436
  %1488 = vmatpush1.bf16.msra.mxu0 %v1435
  %1489 = vmatprep.subr.bf16.mxu0 %v1440
  %1490 = vmatpush1.bf16.msra.mxu0 %v1439
  %1491 = vmatprep.subr.bf16.mxu0 0
  %1492 = vmatpush1.bf16.msra.mxu0 0
  %1493 = vmatprep.subr.bf16.mxu0 0
  %1494 = vmatpush1.bf16.msra.mxu0 0
  %1495 = vmatprep.subr.bf16.mxu0 0
  %1496 = vmatpush1.bf16.msra.mxu0 0
  %1497 = vmatprep.subr.bf16.mxu0 0
  %1498 = vmatpush1.bf16.msra.mxu0 0
  %1499 = vmatprep.subr.bf16.mxu0 0
  %1500 = vmatpush1.bf16.msra.mxu0 0
  %1501 = vmatprep.subr.bf16.mxu0 0
  %1502 = vmatpush1.bf16.msra.mxu0 0
  %1503 = vmatprep.subr.bf16.mxu0 0
  %1504 = vmatpush1.bf16.msra.mxu0 0
  %1505 = vmatprep.subr.bf16.mxu0 0
  %1506 = vmatpush1.bf16.msra.mxu0 0
  %1507 = vmatprep.mubr.bf16.mxu0 0
  %1508 = vmatmul.mubr.bf16.gmra.mrb[0].mxu0 %v1282
  %v1509 = vpop.f32.mrb[0].mxu0
  %v1510 = vadd.f32 0.0, %v1509
  %v1511 = vpop.f32.mrb[0].mxu0
  %v1512 = vadd.f32 0.0, %v1511
  %v1513 = vpop.f32.mrb[0].mxu0
  %v1514 = vpop.f32.mrb[0].mxu0
  %1515 = vdwg.mxu0
  %1516 = vmatprep.subr.bf16.mxu0 %v1414
  %1517 = vmatpush1.bf16.msra.mxu0 %v1413
  %1518 = vmatprep.subr.bf16.mxu0 %v1418
  %1519 = vmatpush1.bf16.msra.mxu0 %v1417
  %1520 = vmatprep.subr.bf16.mxu0 %v1422
  %1521 = vmatpush1.bf16.msra.mxu0 %v1421
  %1522 = vmatprep.subr.bf16.mxu0 %v1426
  %1523 = vmatpush1.bf16.msra.mxu0 %v1425
  %1524 = vmatprep.subr.bf16.mxu0 %v1430
  %1525 = vmatpush1.bf16.msra.mxu0 %v1429
  %1526 = vmatprep.subr.bf16.mxu0 %v1434
  %1527 = vmatpush1.bf16.msra.mxu0 %v1433
  %1528 = vmatprep.subr.bf16.mxu0 %v1438
  %1529 = vmatpush1.bf16.msra.mxu0 %v1437
  %1530 = vmatprep.subr.bf16.mxu0 %v1442
  %1531 = vmatpush1.bf16.msra.mxu0 %v1441
  %1532 = vmatprep.subr.bf16.mxu0 0
  %1533 = vmatpush1.bf16.msra.mxu0 0
  %1534 = vmatprep.subr.bf16.mxu0 0
  %1535 = vmatpush1.bf16.msra.mxu0 0
  %1536 = vmatprep.subr.bf16.mxu0 0
  %1537 = vmatpush1.bf16.msra.mxu0 0
  %1538 = vmatprep.subr.bf16.mxu0 0
  %1539 = vmatpush1.bf16.msra.mxu0 0
  %1540 = vmatprep.subr.bf16.mxu0 0
  %1541 = vmatpush1.bf16.msra.mxu0 0
  %1542 = vmatprep.subr.bf16.mxu0 0
  %1543 = vmatpush1.bf16.msra.mxu0 0
  %1544 = vmatprep.subr.bf16.mxu0 0
  %1545 = vmatpush1.bf16.msra.mxu0 0
  %1546 = vmatprep.subr.bf16.mxu0 0
  %1547 = vmatpush1.bf16.msra.mxu0 0
  %1548 = vmatprep.mubr.bf16.mxu0 0
  %1549 = vmatmul.mubr.bf16.gmra.mrb[0].mxu0 %v1282
  %v1550 = vpop.f32.mrb[0].mxu0
  %v1551 = vadd.f32 0.0, %v1550
  %v1552 = vpop.f32.mrb[0].mxu0
  %v1553 = vadd.f32 0.0, %v1552
  %v1554 = vpop.f32.mrb[0].mxu0
  %v1555 = vpop.f32.mrb[0].mxu0
  %1556 = vdwg.mxu0
  %v1557 = vadd.f32 %v1277, %v1510
  %v1558 = vadd.f32 %v1278, %v1512
  %v1559 = vadd.f32 %v1279, %v1551
  %v1560 = vadd.f32 %v1280, %v1553
  %v1561 = vxor.u32 %v1557, 2147483648
  %v1562 = vmul.f32 %v1561, 1.442695
  %v1563 = vpow.pop %v1562
  %v1564 = vadd.f32 %v1563, 1.0
  %v1565 = vrcp.pop %v1564
  %v1566 = vmul.f32 1.0, %v1565
  %v1567 = vxor.u32 %v1558, 2147483648
  %v1568 = vmul.f32 %v1567, 1.442695
  %v1569 = vpow.pop %v1568
  %v1570 = vadd.f32 %v1569, 1.0
  %v1571 = vrcp.pop %v1570
  %v1572 = vmul.f32 1.0, %v1571
  %v1573 = vtanh.pop %v1559
  %v1574 = vxor.u32 %v1560, 2147483648
  %v1575 = vmul.f32 %v1574, 1.442695
  %v1576 = vpow.pop %v1575
  %v1577 = vadd.f32 %v1576, 1.0
  %v1578 = vrcp.pop %v1577
  %v1579 = vmul.f32 1.0, %v1578
  %v1580 = vld [vmem:[#allocation3] sm:$0xff]
  %v1581 = vmul.f32 %v1572, %v1580
  %v1582 = vmul.f32 %v1566, %v1573
  %v1583 = vadd.f32 %v1581, %v1582
  %v1584 = vtanh.pop %v1583
  %v1585 = vmul.f32 %v1579, %v1584
  %1586 = vst [vmem:[#allocation3] sm:$0xff] %v1583
  %1587 = vst [vmem:[#allocation2] sm:$0xff] %v1585
  %v1588 = vpack.c.bf16 %v1585, %v1585
  %s1589 = scalar_lea.vmem %s2, 16
  %1590 = vst [vmem:[%s1589] sm:$0xf] %v1588
  %s1591 = scalar_lea.vmem %s0, 160
  %v1592 = vld [vmem:[%s1591] sm:$0xff]
  %v1593 = vld [vmem:[%s1591 + $0x8] sm:$0xff]
  %v1594 = vld [vmem:[%s1591 + $0x10] sm:$0xff]
  %v1595 = vld [vmem:[%s1591 + $0x18] sm:$0xff]
  %v1596 = vld [vmem:[#allocation2] sm:$0xff]
  %v1597 = vpack.c.bf16 %v1596, %v1596
  %v1598 = vld [vmem:[%s1] sm:$0xff]
  %v1599 = vld [vmem:[%s1 + $0x8] sm:$0xff]
  %v1600 = vld [vmem:[%s1 + $0x10] sm:$0xff]
  %v1601 = vld [vmem:[%s1 + $0x18] sm:$0xff]
  %v1602 = vld [vmem:[%s1 + $0x20] sm:$0xff]
  %v1603 = vld [vmem:[%s1 + $0x28] sm:$0xff]
  %v1604 = vld [vmem:[%s1 + $0x30] sm:$0xff]
  %v1605 = vld [vmem:[%s1 + $0x38] sm:$0xff]
  %v1606 = vld [vmem:[%s1 + $0x40] sm:$0xff]
  %v1607 = vld [vmem:[%s1 + $0x48] sm:$0xff]
  %v1608 = vld [vmem:[%s1 + $0x50] sm:$0xff]
  %v1609 = vld [vmem:[%s1 + $0x58] sm:$0xff]
  %v1610 = vld [vmem:[%s1 + $0x60] sm:$0xff]
  %v1611 = vld [vmem:[%s1 + $0x68] sm:$0xff]
  %v1612 = vld [vmem:[%s1 + $0x70] sm:$0xff]
  %v1613 = vld [vmem:[%s1 + $0x78] sm:$0xff]
  %v1614 = vld [vmem:[%s1 + $0x80] sm:$0xff]
  %v1615 = vld [vmem:[%s1 + $0x88] sm:$0xff]
  %v1616 = vld [vmem:[%s1 + $0x90] sm:$0xff]
  %v1617 = vld [vmem:[%s1 + $0x98] sm:$0xff]
  %v1618 = vld [vmem:[%s1 + $0xa0] sm:$0xff]
  %v1619 = vld [vmem:[%s1 + $0xa8] sm:$0xff]
  %v1620 = vld [vmem:[%s1 + $0xb0] sm:$0xff]
  %v1621 = vld [vmem:[%s1 + $0xb8] sm:$0xff]
  %v1622 = vld [vmem:[%s1 + $0xc0] sm:$0xff]
  %v1623 = vld [vmem:[%s1 + $0xc8] sm:$0xff]
  %v1624 = vld [vmem:[%s1 + $0xd0] sm:$0xff]
  %v1625 = vld [vmem:[%s1 + $0xd8] sm:$0xff]
  %v1626 = vld [vmem:[%s1 + $0xe0] sm:$0xff]
  %v1627 = vld [vmem:[%s1 + $0xe8] sm:$0xff]
  %v1628 = vld [vmem:[%s1 + $0xf0] sm:$0xff]
  %v1629 = vld [vmem:[%s1 + $0xf8] sm:$0xff]
  %v1662 = vunpack.c.l.b16 %v1598
  %v1663 = vunpack.c.h.b16 %v1598
  %v1664 = vunpack.c.l.b16 %v1599
  %v1665 = vunpack.c.h.b16 %v1599
  %v1666 = vunpack.c.l.b16 %v1600
  %v1667 = vunpack.c.h.b16 %v1600
  %v1668 = vunpack.c.l.b16 %v1601
  %v1669 = vunpack.c.h.b16 %v1601
  %v1670 = vunpack.c.l.b16 %v1602
  %v1671 = vunpack.c.h.b16 %v1602
  %v1672 = vunpack.c.l.b16 %v1603
  %v1673 = vunpack.c.h.b16 %v1603
  %v1674 = vunpack.c.l.b16 %v1604
  %v1675 = vunpack.c.h.b16 %v1604
  %v1676 = vunpack.c.l.b16 %v1605
  %v1677 = vunpack.c.h.b16 %v1605
  %v1678 = vunpack.c.l.b16 %v1606
  %v1679 = vunpack.c.h.b16 %v1606
  %v1680 = vunpack.c.l.b16 %v1607
  %v1681 = vunpack.c.h.b16 %v1607
  %v1682 = vunpack.c.l.b16 %v1608
  %v1683 = vunpack.c.h.b16 %v1608
  %v1684 = vunpack.c.l.b16 %v1609
  %v1685 = vunpack.c.h.b16 %v1609
  %v1686 = vunpack.c.l.b16 %v1610
  %v1687 = vunpack.c.h.b16 %v1610
  %v1688 = vunpack.c.l.b16 %v1611
  %v1689 = vunpack.c.h.b16 %v1611
  %v1690 = vunpack.c.l.b16 %v1612
  %v1691 = vunpack.c.h.b16 %v1612
  %v1692 = vunpack.c.l.b16 %v1613
  %v1693 = vunpack.c.h.b16 %v1613
  %v1694 = vunpack.c.l.b16 %v1614
  %v1695 = vunpack.c.h.b16 %v1614
  %v1696 = vunpack.c.l.b16 %v1615
  %v1697 = vunpack.c.h.b16 %v1615
  %v1698 = vunpack.c.l.b16 %v1616
  %v1699 = vunpack.c.h.b16 %v1616
  %v1700 = vunpack.c.l.b16 %v1617
  %v1701 = vunpack.c.h.b16 %v1617
  %v1702 = vunpack.c.l.b16 %v1618
  %v1703 = vunpack.c.h.b16 %v1618
  %v1704 = vunpack.c.l.b16 %v1619
  %v1705 = vunpack.c.h.b16 %v1619
  %v1706 = vunpack.c.l.b16 %v1620
  %v1707 = vunpack.c.h.b16 %v1620
  %v1708 = vunpack.c.l.b16 %v1621
  %v1709 = vunpack.c.h.b16 %v1621
  %v1710 = vunpack.c.l.b16 %v1622
  %v1711 = vunpack.c.h.b16 %v1622
  %v1712 = vunpack.c.l.b16 %v1623
  %v1713 = vunpack.c.h.b16 %v1623
  %v1714 = vunpack.c.l.b16 %v1624
  %v1715 = vunpack.c.h.b16 %v1624
  %v1716 = vunpack.c.l.b16 %v1625
  %v1717 = vunpack.c.h.b16 %v1625
  %v1718 = vunpack.c.l.b16 %v1626
  %v1719 = vunpack.c.h.b16 %v1626
  %v1720 = vunpack.c.l.b16 %v1627
  %v1721 = vunpack.c.h.b16 %v1627
  %v1722 = vunpack.c.l.b16 %v1628
  %v1723 = vunpack.c.h.b16 %v1628
  %v1724 = vunpack.c.l.b16 %v1629
  %v1725 = vunpack.c.h.b16 %v1629
  %v1726 = vpack.c.b16 %v1666, %v1662
  %v1727 = vpack.c.b16 %v1667, %v1663
  %v1728 = vpack.c.b16 %v1668, %v1664
  %v1729 = vpack.c.b16 %v1669, %v1665
  %v1730 = vpack.c.b16 %v1674, %v1670
  %v1731 = vpack.c.b16 %v1675, %v1671
  %v1732 = vpack.c.b16 %v1676, %v1672
  %v1733 = vpack.c.b16 %v1677, %v1673
  %v1734 = vpack.c.b16 %v1682, %v1678
  %v1735 = vpack.c.b16 %v1683, %v1679
  %v1736 = vpack.c.b16 %v1684, %v1680
  %v1737 = vpack.c.b16 %v1685, %v1681
  %v1738 = vpack.c.b16 %v1690, %v1686
  %v1739 = vpack.c.b16 %v1691, %v1687
  %v1740 = vpack.c.b16 %v1692, %v1688
  %v1741 = vpack.c.b16 %v1693, %v1689
  %v1742 = vpack.c.b16 %v1698, %v1694
  %v1743 = vpack.c.b16 %v1699, %v1695
  %v1744 = vpack.c.b16 %v1700, %v1696
  %v1745 = vpack.c.b16 %v1701, %v1697
  %v1746 = vpack.c.b16 %v1706, %v1702
  %v1747 = vpack.c.b16 %v1707, %v1703
  %v1748 = vpack.c.b16 %v1708, %v1704
  %v1749 = vpack.c.b16 %v1709, %v1705
  %v1750 = vpack.c.b16 %v1714, %v1710
  %v1751 = vpack.c.b16 %v1715, %v1711
  %v1752 = vpack.c.b16 %v1716, %v1712
  %v1753 = vpack.c.b16 %v1717, %v1713
  %v1754 = vpack.c.b16 %v1722, %v1718
  %v1755 = vpack.c.b16 %v1723, %v1719
  %v1756 = vpack.c.b16 %v1724, %v1720
  %v1757 = vpack.c.b16 %v1725, %v1721
  %1790 = vmatprep.subr.bf16.mxu0 %v1727
  %1791 = vmatpush1.bf16.msra.mxu0 %v1726
  %1792 = vmatprep.subr.bf16.mxu0 %v1731
  %1793 = vmatpush1.bf16.msra.mxu0 %v1730
  %1794 = vmatprep.subr.bf16.mxu0 %v1735
  %1795 = vmatpush1.bf16.msra.mxu0 %v1734
  %1796 = vmatprep.subr.bf16.mxu0 %v1739
  %1797 = vmatpush1.bf16.msra.mxu0 %v1738
  %1798 = vmatprep.subr.bf16.mxu0 %v1743
  %1799 = vmatpush1.bf16.msra.mxu0 %v1742
  %1800 = vmatprep.subr.bf16.mxu0 %v1747
  %1801 = vmatpush1.bf16.msra.mxu0 %v1746
  %1802 = vmatprep.subr.bf16.mxu0 %v1751
  %1803 = vmatpush1.bf16.msra.mxu0 %v1750
  %1804 = vmatprep.subr.bf16.mxu0 %v1755
  %1805 = vmatpush1.bf16.msra.mxu0 %v1754
  %1806 = vmatprep.subr.bf16.mxu0 0
  %1807 = vmatpush1.bf16.msra.mxu0 0
  %1808 = vmatprep.subr.bf16.mxu0 0
  %1809 = vmatpush1.bf16.msra.mxu0 0
  %1810 = vmatprep.subr.bf16.mxu0 0
  %1811 = vmatpush1.bf16.msra.mxu0 0
  %1812 = vmatprep.subr.bf16.mxu0 0
  %1813 = vmatpush1.bf16.msra.mxu0 0
  %1814 = vmatprep.subr.bf16.mxu0 0
  %1815 = vmatpush1.bf16.msra.mxu0 0
  %1816 = vmatprep.subr.bf16.mxu0 0
  %1817 = vmatpush1.bf16.msra.mxu0 0
  %1818 = vmatprep.subr.bf16.mxu0 0
  %1819 = vmatpush1.bf16.msra.mxu0 0
  %1820 = vmatprep.subr.bf16.mxu0 0
  %1821 = vmatpush1.bf16.msra.mxu0 0
  %1822 = vmatprep.mubr.bf16.mxu0 0
  %1823 = vmatmul.mubr.bf16.gmra.mrb[0].mxu0 %v1597
  %v1824 = vpop.f32.mrb[0].mxu0
  %v1825 = vadd.f32 0.0, %v1824
  %v1826 = vpop.f32.mrb[0].mxu0
  %v1827 = vadd.f32 0.0, %v1826
  %v1828 = vpop.f32.mrb[0].mxu0
  %v1829 = vpop.f32.mrb[0].mxu0
  %1830 = vdwg.mxu0
  %1831 = vmatprep.subr.bf16.mxu0 %v1729
  %1832 = vmatpush1.bf16.msra.mxu0 %v1728
  %1833 = vmatprep.subr.bf16.mxu0 %v1733
  %1834 = vmatpush1.bf16.msra.mxu0 %v1732
  %1835 = vmatprep.subr.bf16.mxu0 %v1737
  %1836 = vmatpush1.bf16.msra.mxu0 %v1736
  %1837 = vmatprep.subr.bf16.mxu0 %v1741
  %1838 = vmatpush1.bf16.msra.mxu0 %v1740
  %1839 = vmatprep.subr.bf16.mxu0 %v1745
  %1840 = vmatpush1.bf16.msra.mxu0 %v1744
  %1841 = vmatprep.subr.bf16.mxu0 %v1749
  %1842 = vmatpush1.bf16.msra.mxu0 %v1748
  %1843 = vmatprep.subr.bf16.mxu0 %v1753
  %1844 = vmatpush1.bf16.msra.mxu0 %v1752
  %1845 = vmatprep.subr.bf16.mxu0 %v1757
  %1846 = vmatpush1.bf16.msra.mxu0 %v1756
  %1847 = vmatprep.subr.bf16.mxu0 0
  %1848 = vmatpush1.bf16.msra.mxu0 0
  %1849 = vmatprep.subr.bf16.mxu0 0
  %1850 = vmatpush1.bf16.msra.mxu0 0
  %1851 = vmatprep.subr.bf16.mxu0 0
  %1852 = vmatpush1.bf16.msra.mxu0 0
  %1853 = vmatprep.subr.bf16.mxu0 0
  %1854 = vmatpush1.bf16.msra.mxu0 0
  %1855 = vmatprep.subr.bf16.mxu0 0
  %1856 = vmatpush1.bf16.msra.mxu0 0
  %1857 = vmatprep.subr.bf16.mxu0 0
  %1858 = vmatpush1.bf16.msra.mxu0 0
  %1859 = vmatprep.subr.bf16.mxu0 0
  %1860 = vmatpush1.bf16.msra.mxu0 0
  %1861 = vmatprep.subr.bf16.mxu0 0
  %1862 = vmatpush1.bf16.msra.mxu0 0
  %1863 = vmatprep.mubr.bf16.mxu0 0
  %1864 = vmatmul.mubr.bf16.gmra.mrb[0].mxu0 %v1597
  %v1865 = vpop.f32.mrb[0].mxu0
  %v1866 = vadd.f32 0.0, %v1865
  %v1867 = vpop.f32.mrb[0].mxu0
  %v1868 = vadd.f32 0.0, %v1867
  %v1869 = vpop.f32.mrb[0].mxu0
  %v1870 = vpop.f32.mrb[0].mxu0
  %1871 = vdwg.mxu0
  %v1872 = vadd.f32 %v1592, %v1825
  %v1873 = vadd.f32 %v1593, %v1827
  %v1874 = vadd.f32 %v1594, %v1866
  %v1875 = vadd.f32 %v1595, %v1868
  %v1876 = vxor.u32 %v1872, 2147483648
  %v1877 = vmul.f32 %v1876, 1.442695
  %v1878 = vpow.pop %v1877
  %v1879 = vadd.f32 %v1878, 1.0
  %v1880 = vrcp.pop %v1879
  %v1881 = vmul.f32 1.0, %v1880
  %v1882 = vxor.u32 %v1873, 2147483648
  %v1883 = vmul.f32 %v1882, 1.442695
  %v1884 = vpow.pop %v1883
  %v1885 = vadd.f32 %v1884, 1.0
  %v1886 = vrcp.pop %v1885
  %v1887 = vmul.f32 1.0, %v1886
  %v1888 = vtanh.pop %v1874
  %v1889 = vxor.u32 %v1875, 2147483648
  %v1890 = vmul.f32 %v1889, 1.442695
  %v1891 = vpow.pop %v1890
  %v1892 = vadd.f32 %v1891, 1.0
  %v1893 = vrcp.pop %v1892
  %v1894 = vmul.f32 1.0, %v1893
  %v1895 = vld [vmem:[#allocation3] sm:$0xff]
  %v1896 = vmul.f32 %v1887, %v1895
  %v1897 = vmul.f32 %v1881, %v1888
  %v1898 = vadd.f32 %v1896, %v1897
  %v1899 = vtanh.pop %v1898
  %v1900 = vmul.f32 %v1894, %v1899
  %1901 = vst [vmem:[#allocation3] sm:$0xff] %v1898
  %1902 = vst [vmem:[#allocation2] sm:$0xff] %v1900
  %v1903 = vpack.c.bf16 %v1900, %v1900
  %s1904 = scalar_lea.vmem %s2, 20
  %1905 = vst [vmem:[%s1904] sm:$0xf] %v1903
  %s1906 = scalar_lea.vmem %s0, 192
  %v1907 = vld [vmem:[%s1906] sm:$0xff]
  %v1908 = vld [vmem:[%s1906 + $0x8] sm:$0xff]
  %v1909 = vld [vmem:[%s1906 + $0x10] sm:$0xff]
  %v1910 = vld [vmem:[%s1906 + $0x18] sm:$0xff]
  %v1911 = vld [vmem:[#allocation2] sm:$0xff]
  %v1912 = vpack.c.bf16 %v1911, %v1911
  %v1913 = vld [vmem:[%s1] sm:$0xff]
  %v1914 = vld [vmem:[%s1 + $0x8] sm:$0xff]
  %v1915 = vld [vmem:[%s1 + $0x10] sm:$0xff]
  %v1916 = vld [vmem:[%s1 + $0x18] sm:$0xff]
  %v1917 = vld [vmem:[%s1 + $0x20] sm:$0xff]
  %v1918 = vld [vmem:[%s1 + $0x28] sm:$0xff]
  %v1919 = vld [vmem:[%s1 + $0x30] sm:$0xff]
  %v1920 = vld [vmem:[%s1 + $0x38] sm:$0xff]
  %v1921 = vld [vmem:[%s1 + $0x40] sm:$0xff]
  %v1922 = vld [vmem:[%s1 + $0x48] sm:$0xff]
  %v1923 = vld [vmem:[%s1 + $0x50] sm:$0xff]
  %v1924 = vld [vmem:[%s1 + $0x58] sm:$0xff]
  %v1925 = vld [vmem:[%s1 + $0x60] sm:$0xff]
  %v1926 = vld [vmem:[%s1 + $0x68] sm:$0xff]
  %v1927 = vld [vmem:[%s1 + $0x70] sm:$0xff]
  %v1928 = vld [vmem:[%s1 + $0x78] sm:$0xff]
  %v1929 = vld [vmem:[%s1 + $0x80] sm:$0xff]
  %v1930 = vld [vmem:[%s1 + $0x88] sm:$0xff]
  %v1931 = vld [vmem:[%s1 + $0x90] sm:$0xff]
  %v1932 = vld [vmem:[%s1 + $0x98] sm:$0xff]
  %v1933 = vld [vmem:[%s1 + $0xa0] sm:$0xff]
  %v1934 = vld [vmem:[%s1 + $0xa8] sm:$0xff]
  %v1935 = vld [vmem:[%s1 + $0xb0] sm:$0xff]
  %v1936 = vld [vmem:[%s1 + $0xb8] sm:$0xff]
  %v1937 = vld [vmem:[%s1 + $0xc0] sm:$0xff]
  %v1938 = vld [vmem:[%s1 + $0xc8] sm:$0xff]
  %v1939 = vld [vmem:[%s1 + $0xd0] sm:$0xff]
  %v1940 = vld [vmem:[%s1 + $0xd8] sm:$0xff]
  %v1941 = vld [vmem:[%s1 + $0xe0] sm:$0xff]
  %v1942 = vld [vmem:[%s1 + $0xe8] sm:$0xff]
  %v1943 = vld [vmem:[%s1 + $0xf0] sm:$0xff]
  %v1944 = vld [vmem:[%s1 + $0xf8] sm:$0xff]
  %v1977 = vunpack.c.l.b16 %v1913
  %v1978 = vunpack.c.h.b16 %v1913
  %v1979 = vunpack.c.l.b16 %v1914
  %v1980 = vunpack.c.h.b16 %v1914
  %v1981 = vunpack.c.l.b16 %v1915
  %v1982 = vunpack.c.h.b16 %v1915
  %v1983 = vunpack.c.l.b16 %v1916
  %v1984 = vunpack.c.h.b16 %v1916
  %v1985 = vunpack.c.l.b16 %v1917
  %v1986 = vunpack.c.h.b16 %v1917
  %v1987 = vunpack.c.l.b16 %v1918
  %v1988 = vunpack.c.h.b16 %v1918
  %v1989 = vunpack.c.l.b16 %v1919
  %v1990 = vunpack.c.h.b16 %v1919
  %v1991 = vunpack.c.l.b16 %v1920
  %v1992 = vunpack.c.h.b16 %v1920
  %v1993 = vunpack.c.l.b16 %v1921
  %v1994 = vunpack.c.h.b16 %v1921
  %v1995 = vunpack.c.l.b16 %v1922
  %v1996 = vunpack.c.h.b16 %v1922
  %v1997 = vunpack.c.l.b16 %v1923
  %v1998 = vunpack.c.h.b16 %v1923
  %v1999 = vunpack.c.l.b16 %v1924
  %v2000 = vunpack.c.h.b16 %v1924
  %v2001 = vunpack.c.l.b16 %v1925
  %v2002 = vunpack.c.h.b16 %v1925
  %v2003 = vunpack.c.l.b16 %v1926
  %v2004 = vunpack.c.h.b16 %v1926
  %v2005 = vunpack.c.l.b16 %v1927
  %v2006 = vunpack.c.h.b16 %v1927
  %v2007 = vunpack.c.l.b16 %v1928
  %v2008 = vunpack.c.h.b16 %v1928
  %v2009 = vunpack.c.l.b16 %v1929
  %v2010 = vunpack.c.h.b16 %v1929
  %v2011 = vunpack.c.l.b16 %v1930
  %v2012 = vunpack.c.h.b16 %v1930
  %v2013 = vunpack.c.l.b16 %v1931
  %v2014 = vunpack.c.h.b16 %v1931
  %v2015 = vunpack.c.l.b16 %v1932
  %v2016 = vunpack.c.h.b16 %v1932
  %v2017 = vunpack.c.l.b16 %v1933
  %v2018 = vunpack.c.h.b16 %v1933
  %v2019 = vunpack.c.l.b16 %v1934
  %v2020 = vunpack.c.h.b16 %v1934
  %v2021 = vunpack.c.l.b16 %v1935
  %v2022 = vunpack.c.h.b16 %v1935
  %v2023 = vunpack.c.l.b16 %v1936
  %v2024 = vunpack.c.h.b16 %v1936
  %v2025 = vunpack.c.l.b16 %v1937
  %v2026 = vunpack.c.h.b16 %v1937
  %v2027 = vunpack.c.l.b16 %v1938
  %v2028 = vunpack.c.h.b16 %v1938
  %v2029 = vunpack.c.l.b16 %v1939
  %v2030 = vunpack.c.h.b16 %v1939
  %v2031 = vunpack.c.l.b16 %v1940
  %v2032 = vunpack.c.h.b16 %v1940
  %v2033 = vunpack.c.l.b16 %v1941
  %v2034 = vunpack.c.h.b16 %v1941
  %v2035 = vunpack.c.l.b16 %v1942
  %v2036 = vunpack.c.h.b16 %v1942
  %v2037 = vunpack.c.l.b16 %v1943
  %v2038 = vunpack.c.h.b16 %v1943
  %v2039 = vunpack.c.l.b16 %v1944
  %v2040 = vunpack.c.h.b16 %v1944
  %v2041 = vpack.c.b16 %v1981, %v1977
  %v2042 = vpack.c.b16 %v1982, %v1978
  %v2043 = vpack.c.b16 %v1983, %v1979
  %v2044 = vpack.c.b16 %v1984, %v1980
  %v2045 = vpack.c.b16 %v1989, %v1985
  %v2046 = vpack.c.b16 %v1990, %v1986
  %v2047 = vpack.c.b16 %v1991, %v1987
  %v2048 = vpack.c.b16 %v1992, %v1988
  %v2049 = vpack.c.b16 %v1997, %v1993
  %v2050 = vpack.c.b16 %v1998, %v1994
  %v2051 = vpack.c.b16 %v1999, %v1995
  %v2052 = vpack.c.b16 %v2000, %v1996
  %v2053 = vpack.c.b16 %v2005, %v2001
  %v2054 = vpack.c.b16 %v2006, %v2002
  %v2055 = vpack.c.b16 %v2007, %v2003
  %v2056 = vpack.c.b16 %v2008, %v2004
  %v2057 = vpack.c.b16 %v2013, %v2009
  %v2058 = vpack.c.b16 %v2014, %v2010
  %v2059 = vpack.c.b16 %v2015, %v2011
  %v2060 = vpack.c.b16 %v2016, %v2012
  %v2061 = vpack.c.b16 %v2021, %v2017
  %v2062 = vpack.c.b16 %v2022, %v2018
  %v2063 = vpack.c.b16 %v2023, %v2019
  %v2064 = vpack.c.b16 %v2024, %v2020
  %v2065 = vpack.c.b16 %v2029, %v2025
  %v2066 = vpack.c.b16 %v2030, %v2026
  %v2067 = vpack.c.b16 %v2031, %v2027
  %v2068 = vpack.c.b16 %v2032, %v2028
  %v2069 = vpack.c.b16 %v2037, %v2033
  %v2070 = vpack.c.b16 %v2038, %v2034
  %v2071 = vpack.c.b16 %v2039, %v2035
  %v2072 = vpack.c.b16 %v2040, %v2036
  %2105 = vmatprep.subr.bf16.mxu0 %v2042
  %2106 = vmatpush1.bf16.msra.mxu0 %v2041
  %2107 = vmatprep.subr.bf16.mxu0 %v2046
  %2108 = vmatpush1.bf16.msra.mxu0 %v2045
  %2109 = vmatprep.subr.bf16.mxu0 %v2050
  %2110 = vmatpush1.bf16.msra.mxu0 %v2049
  %2111 = vmatprep.subr.bf16.mxu0 %v2054
  %2112 = vmatpush1.bf16.msra.mxu0 %v2053
  %2113 = vmatprep.subr.bf16.mxu0 %v2058
  %2114 = vmatpush1.bf16.msra.mxu0 %v2057
  %2115 = vmatprep.subr.bf16.mxu0 %v2062
  %2116 = vmatpush1.bf16.msra.mxu0 %v2061
  %2117 = vmatprep.subr.bf16.mxu0 %v2066
  %2118 = vmatpush1.bf16.msra.mxu0 %v2065
  %2119 = vmatprep.subr.bf16.mxu0 %v2070
  %2120 = vmatpush1.bf16.msra.mxu0 %v2069
  %2121 = vmatprep.subr.bf16.mxu0 0
  %2122 = vmatpush1.bf16.msra.mxu0 0
  %2123 = vmatprep.subr.bf16.mxu0 0
  %2124 = vmatpush1.bf16.msra.mxu0 0
  %2125 = vmatprep.subr.bf16.mxu0 0
  %2126 = vmatpush1.bf16.msra.mxu0 0
  %2127 = vmatprep.subr.bf16.mxu0 0
  %2128 = vmatpush1.bf16.msra.mxu0 0
  %2129 = vmatprep.subr.bf16.mxu0 0
  %2130 = vmatpush1.bf16.msra.mxu0 0
  %2131 = vmatprep.subr.bf16.mxu0 0
  %2132 = vmatpush1.bf16.msra.mxu0 0
  %2133 = vmatprep.subr.bf16.mxu0 0
  %2134 = vmatpush1.bf16.msra.mxu0 0
  %2135 = vmatprep.subr.bf16.mxu0 0
  %2136 = vmatpush1.bf16.msra.mxu0 0
  %2137 = vmatprep.mubr.bf16.mxu0 0
  %2138 = vmatmul.mubr.bf16.gmra.mrb[0].mxu0 %v1912
  %v2139 = vpop.f32.mrb[0].mxu0
  %v2140 = vadd.f32 0.0, %v2139
  %v2141 = vpop.f32.mrb[0].mxu0
  %v2142 = vadd.f32 0.0, %v2141
  %v2143 = vpop.f32.mrb[0].mxu0
  %v2144 = vpop.f32.mrb[0].mxu0
  %2145 = vdwg.mxu0
  %2146 = vmatprep.subr.bf16.mxu0 %v2044
  %2147 = vmatpush1.bf16.msra.mxu0 %v2043
  %2148 = vmatprep.subr.bf16.mxu0 %v2048
  %2149 = vmatpush1.bf16.msra.mxu0 %v2047
  %2150 = vmatprep.subr.bf16.mxu0 %v2052
  %2151 = vmatpush1.bf16.msra.mxu0 %v2051
  %2152 = vmatprep.subr.bf16.mxu0 %v2056
  %2153 = vmatpush1.bf16.msra.mxu0 %v2055
  %2154 = vmatprep.subr.bf16.mxu0 %v2060
  %2155 = vmatpush1.bf16.msra.mxu0 %v2059
  %2156 = vmatprep.subr.bf16.mxu0 %v2064
  %2157 = vmatpush1.bf16.msra.mxu0 %v2063
  %2158 = vmatprep.subr.bf16.mxu0 %v2068
  %2159 = vmatpush1.bf16.msra.mxu0 %v2067
  %2160 = vmatprep.subr.bf16.mxu0 %v2072
  %2161 = vmatpush1.bf16.msra.mxu0 %v2071
  %2162 = vmatprep.subr.bf16.mxu0 0
  %2163 = vmatpush1.bf16.msra.mxu0 0
  %2164 = vmatprep.subr.bf16.mxu0 0
  %2165 = vmatpush1.bf16.msra.mxu0 0
  %2166 = vmatprep.subr.bf16.mxu0 0
  %2167 = vmatpush1.bf16.msra.mxu0 0
  %2168 = vmatprep.subr.bf16.mxu0 0
  %2169 = vmatpush1.bf16.msra.mxu0 0
  %2170 = vmatprep.subr.bf16.mxu0 0
  %2171 = vmatpush1.bf16.msra.mxu0 0
  %2172 = vmatprep.subr.bf16.mxu0 0
  %2173 = vmatpush1.bf16.msra.mxu0 0
  %2174 = vmatprep.subr.bf16.mxu0 0
  %2175 = vmatpush1.bf16.msra.mxu0 0
  %2176 = vmatprep.subr.bf16.mxu0 0
  %2177 = vmatpush1.bf16.msra.mxu0 0
  %2178 = vmatprep.mubr.bf16.mxu0 0
  %2179 = vmatmul.mubr.bf16.gmra.mrb[0].mxu0 %v1912
  %v2180 = vpop.f32.mrb[0].mxu0
  %v2181 = vadd.f32 0.0, %v2180
  %v2182 = vpop.f32.mrb[0].mxu0
  %v2183 = vadd.f32 0.0, %v2182
  %v2184 = vpop.f32.mrb[0].mxu0
  %v2185 = vpop.f32.mrb[0].mxu0
  %2186 = vdwg.mxu0
  %v2187 = vadd.f32 %v1907, %v2140
  %v2188 = vadd.f32 %v1908, %v2142
  %v2189 = vadd.f32 %v1909, %v2181
  %v2190 = vadd.f32 %v1910, %v2183
  %v2191 = vxor.u32 %v2187, 2147483648
  %v2192 = vmul.f32 %v2191, 1.442695
  %v2193 = vpow.pop %v2192
  %v2194 = vadd.f32 %v2193, 1.0
  %v2195 = vrcp.pop %v2194
  %v2196 = vmul.f32 1.0, %v2195
  %v2197 = vxor.u32 %v2188, 2147483648
  %v2198 = vmul.f32 %v2197, 1.442695
  %v2199 = vpow.pop %v2198
  %v2200 = vadd.f32 %v2199, 1.0
  %v2201 = vrcp.pop %v2200
  %v2202 = vmul.f32 1.0, %v2201
  %v2203 = vtanh.pop %v2189
  %v2204 = vxor.u32 %v2190, 2147483648
  %v2205 = vmul.f32 %v2204, 1.442695
  %v2206 = vpow.pop %v2205
  %v2207 = vadd.f32 %v2206, 1.0
  %v2208 = vrcp.pop %v2207
  %v2209 = vmul.f32 1.0, %v2208
  %v2210 = vld [vmem:[#allocation3] sm:$0xff]
  %v2211 = vmul.f32 %v2202, %v2210
  %v2212 = vmul.f32 %v2196, %v2203
  %v2213 = vadd.f32 %v2211, %v2212
  %v2214 = vtanh.pop %v2213
  %v2215 = vmul.f32 %v2209, %v2214
  %2216 = vst [vmem:[#allocation3] sm:$0xff] %v2213
  %2217 = vst [vmem:[#allocation2] sm:$0xff] %v2215
  %v2218 = vpack.c.bf16 %v2215, %v2215
  %s2219 = scalar_lea.vmem %s2, 24
  %2220 = vst [vmem:[%s2219] sm:$0xf] %v2218
  %s2221 = scalar_lea.vmem %s0, 224
  %v2222 = vld [vmem:[%s2221] sm:$0xff]
  %v2223 = vld [vmem:[%s2221 + $0x8] sm:$0xff]
  %v2224 = vld [vmem:[%s2221 + $0x10] sm:$0xff]
  %v2225 = vld [vmem:[%s2221 + $0x18] sm:$0xff]
  %v2226 = vld [vmem:[#allocation2] sm:$0xff]
  %v2227 = vpack.c.bf16 %v2226, %v2226
  %v2228 = vld [vmem:[%s1] sm:$0xff]
  %v2229 = vld [vmem:[%s1 + $0x8] sm:$0xff]
  %v2230 = vld [vmem:[%s1 + $0x10] sm:$0xff]
  %v2231 = vld [vmem:[%s1 + $0x18] sm:$0xff]
  %v2232 = vld [vmem:[%s1 + $0x20] sm:$0xff]
  %v2233 = vld [vmem:[%s1 + $0x28] sm:$0xff]
  %v2234 = vld [vmem:[%s1 + $0x30] sm:$0xff]
  %v2235 = vld [vmem:[%s1 + $0x38] sm:$0xff]
  %v2236 = vld [vmem:[%s1 + $0x40] sm:$0xff]
  %v2237 = vld [vmem:[%s1 + $0x48] sm:$0xff]
  %v2238 = vld [vmem:[%s1 + $0x50] sm:$0xff]
  %v2239 = vld [vmem:[%s1 + $0x58] sm:$0xff]
  %v2240 = vld [vmem:[%s1 + $0x60] sm:$0xff]
  %v2241 = vld [vmem:[%s1 + $0x68] sm:$0xff]
  %v2242 = vld [vmem:[%s1 + $0x70] sm:$0xff]
  %v2243 = vld [vmem:[%s1 + $0x78] sm:$0xff]
  %v2244 = vld [vmem:[%s1 + $0x80] sm:$0xff]
  %v2245 = vld [vmem:[%s1 + $0x88] sm:$0xff]
  %v2246 = vld [vmem:[%s1 + $0x90] sm:$0xff]
  %v2247 = vld [vmem:[%s1 + $0x98] sm:$0xff]
  %v2248 = vld [vmem:[%s1 + $0xa0] sm:$0xff]
  %v2249 = vld [vmem:[%s1 + $0xa8] sm:$0xff]
  %v2250 = vld [vmem:[%s1 + $0xb0] sm:$0xff]
  %v2251 = vld [vmem:[%s1 + $0xb8] sm:$0xff]
  %v2252 = vld [vmem:[%s1 + $0xc0] sm:$0xff]
  %v2253 = vld [vmem:[%s1 + $0xc8] sm:$0xff]
  %v2254 = vld [vmem:[%s1 + $0xd0] sm:$0xff]
  %v2255 = vld [vmem:[%s1 + $0xd8] sm:$0xff]
  %v2256 = vld [vmem:[%s1 + $0xe0] sm:$0xff]
  %v2257 = vld [vmem:[%s1 + $0xe8] sm:$0xff]
  %v2258 = vld [vmem:[%s1 + $0xf0] sm:$0xff]
  %v2259 = vld [vmem:[%s1 + $0xf8] sm:$0xff]
  %v2292 = vunpack.c.l.b16 %v2228
  %v2293 = vunpack.c.h.b16 %v2228
  %v2294 = vunpack.c.l.b16 %v2229
  %v2295 = vunpack.c.h.b16 %v2229
  %v2296 = vunpack.c.l.b16 %v2230
  %v2297 = vunpack.c.h.b16 %v2230
  %v2298 = vunpack.c.l.b16 %v2231
  %v2299 = vunpack.c.h.b16 %v2231
  %v2300 = vunpack.c.l.b16 %v2232
  %v2301 = vunpack.c.h.b16 %v2232
  %v2302 = vunpack.c.l.b16 %v2233
  %v2303 = vunpack.c.h.b16 %v2233
  %v2304 = vunpack.c.l.b16 %v2234
  %v2305 = vunpack.c.h.b16 %v2234
  %v2306 = vunpack.c.l.b16 %v2235
  %v2307 = vunpack.c.h.b16 %v2235
  %v2308 = vunpack.c.l.b16 %v2236
  %v2309 = vunpack.c.h.b16 %v2236
  %v2310 = vunpack.c.l.b16 %v2237
  %v2311 = vunpack.c.h.b16 %v2237
  %v2312 = vunpack.c.l.b16 %v2238
  %v2313 = vunpack.c.h.b16 %v2238
  %v2314 = vunpack.c.l.b16 %v2239
  %v2315 = vunpack.c.h.b16 %v2239
  %v2316 = vunpack.c.l.b16 %v2240
  %v2317 = vunpack.c.h.b16 %v2240
  %v2318 = vunpack.c.l.b16 %v2241
  %v2319 = vunpack.c.h.b16 %v2241
  %v2320 = vunpack.c.l.b16 %v2242
  %v2321 = vunpack.c.h.b16 %v2242
  %v2322 = vunpack.c.l.b16 %v2243
  %v2323 = vunpack.c.h.b16 %v2243
  %v2324 = vunpack.c.l.b16 %v2244
  %v2325 = vunpack.c.h.b16 %v2244
  %v2326 = vunpack.c.l.b16 %v2245
  %v2327 = vunpack.c.h.b16 %v2245
  %v2328 = vunpack.c.l.b16 %v2246
  %v2329 = vunpack.c.h.b16 %v2246
  %v2330 = vunpack.c.l.b16 %v2247
  %v2331 = vunpack.c.h.b16 %v2247
  %v2332 = vunpack.c.l.b16 %v2248
  %v2333 = vunpack.c.h.b16 %v2248
  %v2334 = vunpack.c.l.b16 %v2249
  %v2335 = vunpack.c.h.b16 %v2249
  %v2336 = vunpack.c.l.b16 %v2250
  %v2337 = vunpack.c.h.b16 %v2250
  %v2338 = vunpack.c.l.b16 %v2251
  %v2339 = vunpack.c.h.b16 %v2251
  %v2340 = vunpack.c.l.b16 %v2252
  %v2341 = vunpack.c.h.b16 %v2252
  %v2342 = vunpack.c.l.b16 %v2253
  %v2343 = vunpack.c.h.b16 %v2253
  %v2344 = vunpack.c.l.b16 %v2254
  %v2345 = vunpack.c.h.b16 %v2254
  %v2346 = vunpack.c.l.b16 %v2255
  %v2347 = vunpack.c.h.b16 %v2255
  %v2348 = vunpack.c.l.b16 %v2256
  %v2349 = vunpack.c.h.b16 %v2256
  %v2350 = vunpack.c.l.b16 %v2257
  %v2351 = vunpack.c.h.b16 %v2257
  %v2352 = vunpack.c.l.b16 %v2258
  %v2353 = vunpack.c.h.b16 %v2258
  %v2354 = vunpack.c.l.b16 %v2259
  %v2355 = vunpack.c.h.b16 %v2259
  %v2356 = vpack.c.b16 %v2296, %v2292
  %v2357 = vpack.c.b16 %v2297, %v2293
  %v2358 = vpack.c.b16 %v2298, %v2294
  %v2359 = vpack.c.b16 %v2299, %v2295
  %v2360 = vpack.c.b16 %v2304, %v2300
  %v2361 = vpack.c.b16 %v2305, %v2301
  %v2362 = vpack.c.b16 %v2306, %v2302
  %v2363 = vpack.c.b16 %v2307, %v2303
  %v2364 = vpack.c.b16 %v2312, %v2308
  %v2365 = vpack.c.b16 %v2313, %v2309
  %v2366 = vpack.c.b16 %v2314, %v2310
  %v2367 = vpack.c.b16 %v2315, %v2311
  %v2368 = vpack.c.b16 %v2320, %v2316
  %v2369 = vpack.c.b16 %v2321, %v2317
  %v2370 = vpack.c.b16 %v2322, %v2318
  %v2371 = vpack.c.b16 %v2323, %v2319
  %v2372 = vpack.c.b16 %v2328, %v2324
  %v2373 = vpack.c.b16 %v2329, %v2325
  %v2374 = vpack.c.b16 %v2330, %v2326
  %v2375 = vpack.c.b16 %v2331, %v2327
  %v2376 = vpack.c.b16 %v2336, %v2332
  %v2377 = vpack.c.b16 %v2337, %v2333
  %v2378 = vpack.c.b16 %v2338, %v2334
  %v2379 = vpack.c.b16 %v2339, %v2335
  %v2380 = vpack.c.b16 %v2344, %v2340
  %v2381 = vpack.c.b16 %v2345, %v2341
  %v2382 = vpack.c.b16 %v2346, %v2342
  %v2383 = vpack.c.b16 %v2347, %v2343
  %v2384 = vpack.c.b16 %v2352, %v2348
  %v2385 = vpack.c.b16 %v2353, %v2349
  %v2386 = vpack.c.b16 %v2354, %v2350
  %v2387 = vpack.c.b16 %v2355, %v2351
  %2420 = vmatprep.subr.bf16.mxu0 %v2357
  %2421 = vmatpush1.bf16.msra.mxu0 %v2356
  %2422 = vmatprep.subr.bf16.mxu0 %v2361
  %2423 = vmatpush1.bf16.msra.mxu0 %v2360
  %2424 = vmatprep.subr.bf16.mxu0 %v2365
  %2425 = vmatpush1.bf16.msra.mxu0 %v2364
  %2426 = vmatprep.subr.bf16.mxu0 %v2369
  %2427 = vmatpush1.bf16.msra.mxu0 %v2368
  %2428 = vmatprep.subr.bf16.mxu0 %v2373
  %2429 = vmatpush1.bf16.msra.mxu0 %v2372
  %2430 = vmatprep.subr.bf16.mxu0 %v2377
  %2431 = vmatpush1.bf16.msra.mxu0 %v2376
  %2432 = vmatprep.subr.bf16.mxu0 %v2381
  %2433 = vmatpush1.bf16.msra.mxu0 %v2380
  %2434 = vmatprep.subr.bf16.mxu0 %v2385
  %2435 = vmatpush1.bf16.msra.mxu0 %v2384
  %2436 = vmatprep.subr.bf16.mxu0 0
  %2437 = vmatpush1.bf16.msra.mxu0 0
  %2438 = vmatprep.subr.bf16.mxu0 0
  %2439 = vmatpush1.bf16.msra.mxu0 0
  %2440 = vmatprep.subr.bf16.mxu0 0
  %2441 = vmatpush1.bf16.msra.mxu0 0
  %2442 = vmatprep.subr.bf16.mxu0 0
  %2443 = vmatpush1.bf16.msra.mxu0 0
  %2444 = vmatprep.subr.bf16.mxu0 0
  %2445 = vmatpush1.bf16.msra.mxu0 0
  %2446 = vmatprep.subr.bf16.mxu0 0
  %2447 = vmatpush1.bf16.msra.mxu0 0
  %2448 = vmatprep.subr.bf16.mxu0 0
  %2449 = vmatpush1.bf16.msra.mxu0 0
  %2450 = vmatprep.subr.bf16.mxu0 0
  %2451 = vmatpush1.bf16.msra.mxu0 0
  %2452 = vmatprep.mubr.bf16.mxu0 0
  %2453 = vmatmul.mubr.bf16.gmra.mrb[0].mxu0 %v2227
  %v2454 = vpop.f32.mrb[0].mxu0
  %v2455 = vadd.f32 0.0, %v2454
  %v2456 = vpop.f32.mrb[0].mxu0
  %v2457 = vadd.f32 0.0, %v2456
  %v2458 = vpop.f32.mrb[0].mxu0
  %v2459 = vpop.f32.mrb[0].mxu0
  %2460 = vdwg.mxu0
  %2461 = vmatprep.subr.bf16.mxu0 %v2359
  %2462 = vmatpush1.bf16.msra.mxu0 %v2358
  %2463 = vmatprep.subr.bf16.mxu0 %v2363
  %2464 = vmatpush1.bf16.msra.mxu0 %v2362
  %2465 = vmatprep.subr.bf16.mxu0 %v2367
  %2466 = vmatpush1.bf16.msra.mxu0 %v2366
  %2467 = vmatprep.subr.bf16.mxu0 %v2371
  %2468 = vmatpush1.bf16.msra.mxu0 %v2370
  %2469 = vmatprep.subr.bf16.mxu0 %v2375
  %2470 = vmatpush1.bf16.msra.mxu0 %v2374
  %2471 = vmatprep.subr.bf16.mxu0 %v2379
  %2472 = vmatpush1.bf16.msra.mxu0 %v2378
  %2473 = vmatprep.subr.bf16.mxu0 %v2383
  %2474 = vmatpush1.bf16.msra.mxu0 %v2382
  %2475 = vmatprep.subr.bf16.mxu0 %v2387
  %2476 = vmatpush1.bf16.msra.mxu0 %v2386
  %2477 = vmatprep.subr.bf16.mxu0 0
  %2478 = vmatpush1.bf16.msra.mxu0 0
  %2479 = vmatprep.subr.bf16.mxu0 0
  %2480 = vmatpush1.bf16.msra.mxu0 0
  %2481 = vmatprep.subr.bf16.mxu0 0
  %2482 = vmatpush1.bf16.msra.mxu0 0
  %2483 = vmatprep.subr.bf16.mxu0 0
  %2484 = vmatpush1.bf16.msra.mxu0 0
  %2485 = vmatprep.subr.bf16.mxu0 0
  %2486 = vmatpush1.bf16.msra.mxu0 0
  %2487 = vmatprep.subr.bf16.mxu0 0
  %2488 = vmatpush1.bf16.msra.mxu0 0
  %2489 = vmatprep.subr.bf16.mxu0 0
  %2490 = vmatpush1.bf16.msra.mxu0 0
  %2491 = vmatprep.subr.bf16.mxu0 0
  %2492 = vmatpush1.bf16.msra.mxu0 0
  %2493 = vmatprep.mubr.bf16.mxu0 0
  %2494 = vmatmul.mubr.bf16.gmra.mrb[0].mxu0 %v2227
  %v2495 = vpop.f32.mrb[0].mxu0
  %v2496 = vadd.f32 0.0, %v2495
  %v2497 = vpop.f32.mrb[0].mxu0
  %v2498 = vadd.f32 0.0, %v2497
  %v2499 = vpop.f32.mrb[0].mxu0
  %v2500 = vpop.f32.mrb[0].mxu0
  %2501 = vdwg.mxu0
  %v2502 = vadd.f32 %v2222, %v2455
  %v2503 = vadd.f32 %v2223, %v2457
  %v2504 = vadd.f32 %v2224, %v2496
  %v2505 = vadd.f32 %v2225, %v2498
  %v2506 = vxor.u32 %v2502, 2147483648
  %v2507 = vmul.f32 %v2506, 1.442695
  %v2508 = vpow.pop %v2507
  %v2509 = vadd.f32 %v2508, 1.0
  %v2510 = vrcp.pop %v2509
  %v2511 = vmul.f32 1.0, %v2510
  %v2512 = vxor.u32 %v2503, 2147483648
  %v2513 = vmul.f32 %v2512, 1.442695
  %v2514 = vpow.pop %v2513
  %v2515 = vadd.f32 %v2514, 1.0
  %v2516 = vrcp.pop %v2515
  %v2517 = vmul.f32 1.0, %v2516
  %v2518 = vtanh.pop %v2504
  %v2519 = vxor.u32 %v2505, 2147483648
  %v2520 = vmul.f32 %v2519, 1.442695
  %v2521 = vpow.pop %v2520
  %v2522 = vadd.f32 %v2521, 1.0
  %v2523 = vrcp.pop %v2522
  %v2524 = vmul.f32 1.0, %v2523
  %v2525 = vld [vmem:[#allocation3] sm:$0xff]
  %v2526 = vmul.f32 %v2517, %v2525
  %v2527 = vmul.f32 %v2511, %v2518
  %v2528 = vadd.f32 %v2526, %v2527
  %v2529 = vtanh.pop %v2528
  %v2530 = vmul.f32 %v2524, %v2529
  %2531 = vst [vmem:[#allocation3] sm:$0xff] %v2528
  %2532 = vst [vmem:[#allocation2] sm:$0xff] %v2530
  %v2533 = vpack.c.bf16 %v2530, %v2530
  %s2534 = scalar_lea.vmem %s2, 28
  %2535 = vst [vmem:[%s2534] sm:$0xf] %v2533
  // Predicated region
  $region14: #{decoder_lstm_forward.1} parent=0 // pred_check
    _
  $region15: #{decoder_lstm_forward.1} parent=0 // pred_check_branch
    %2537 = sbr.rel (0) target = $region17
  $region16: #{decoder_lstm_forward.1} parent=0 // pred_region
    _
  $region17: #{decoder_lstm_forward.1} parent=0 // pred_fallthru
    _
  // Predicated region
  $region18: #{decoder_lstm_forward.1} parent=0 // pred_check
    _
  $region19: #{decoder_lstm_forward.1} parent=0 // pred_check_branch
    %2539 = sbr.rel (0) target = $region21
  $region20: #{decoder_lstm_forward.1} parent=0 // pred_region
    _
  $region21: #{decoder_lstm_forward.1} parent=0 // pred_fallthru
    _

</llo_original>
